<compile_context>
chip_gen: v7x
topology: tpu7x:2x2x1
jax: 0.10.0
libtpu: 0.0.40
codegen_flags: <defaults>
</compile_context>

<pallas_src>
import functools

import jax
import jax.numpy as jnp
import numpy as np
from jax import lax
from jax.experimental import pallas as pl
from jax.experimental.pallas import tpu as pltpu

_HALO = 128  # lane-aligned halo; requires pad = 3*dilation <= 128 (dilation <= 42)


# ----------------------------------------------------------------------------
# Pallas kernel
# ----------------------------------------------------------------------------
def _residual_unit_kernel(x_hbm, a1t_ref, a1h_ref, w1_ref, b1_ref,
                          a2t_ref, a2h_ref, w2_ref, b2_ref,
                          o_ref, xbuf, sem,
                          *, dilation, pad, n_t, mm_dtype):
    C, Tt = o_ref.shape
    H = _HALO
    W = Tt + 2 * H

    b = pl.program_id(0)
    t = pl.program_id(1)
    slot = t % 2

    # ---- manual double-buffered DMA of the overlapped input window --------
    # Window for tile tt covers x columns [tt*Tt - H, tt*Tt + Tt + H); the
    # parts outside [0, T) at the sequence boundaries are zero-filled later.
    # issue() and wait_for() branch identically so start/wait descriptors
    # (and byte counts) match exactly.
    def _cp_interior(tt, s):
        return pltpu.make_async_copy(
            x_hbm.at[b, :, pl.ds(tt * Tt - H, W)], xbuf.at[s], sem.at[s])

    def _cp_first(s):
        return pltpu.make_async_copy(
            x_hbm.at[b, :, pl.ds(0, Tt + H)],
            xbuf.at[s, :, pl.ds(H, Tt + H)], sem.at[s])

    def _cp_last(tt, s):
        return pltpu.make_async_copy(
            x_hbm.at[b, :, pl.ds(tt * Tt - H, Tt + H)],
            xbuf.at[s, :, pl.ds(0, Tt + H)], sem.at[s])

    def _cp_single(s):
        return pltpu.make_async_copy(
            x_hbm.at[b, :, pl.ds(0, Tt)],
            xbuf.at[s, :, pl.ds(H, Tt)], sem.at[s])

    def issue(tt, s):
        if n_t == 1:
            _cp_single(s).start()
        else:
            @pl.when(tt == 0)
            def _():
                _cp_first(s).start()

            @pl.when(tt == n_t - 1)
            def _():
                _cp_last(tt, s).start()

            @pl.when(jnp.logical_and(tt > 0, tt < n_t - 1))
            def _():
                _cp_interior(tt, s).start()

    def wait_for(tt, s):
        if n_t == 1:
            _cp_single(s).wait()
        else:
            @pl.when(tt == 0)
            def _():
                _cp_first(s).wait()

            @pl.when(tt == n_t - 1)
            def _():
                _cp_last(tt, s).wait()

            @pl.when(jnp.logical_and(tt > 0, tt < n_t - 1))
            def _():
                _cp_interior(tt, s).wait()

    @pl.when(t == 0)                       # prime the pipeline (per batch row)
    def _():
        issue(t, slot)

    @pl.when(t + 1 < n_t)                  # prefetch next tile's window
    def _():
        issue(t + 1, 1 - slot)

    wait_for(t, slot)                      # current window now resident in VMEM

    # ---- zero-fill halo columns that fall outside [0, T) -------------------
    # The first tile always lives in slot 0 and the last tile in slot
    # (n_t-1) % 2, so these stores use static indices.  snake(0) == 0, so a
    # zero halo reproduces Conv1d's zero padding exactly.
    @pl.when(t == 0)
    def _():
        xbuf[0, :, 0:H] = jnp.zeros((C, H), xbuf.dtype)

    @pl.when(t == n_t - 1)
    def _():
        xbuf[(n_t - 1) % 2, :, H + Tt:W] = jnp.zeros((C, H), xbuf.dtype)

    # ---- compute -----------------------------------------------------------
    xw = xbuf[slot]                        # (C, W) f32 window incl. halos

    # Snake1d:  x + (a+1e-9)^-1 sin(a x)^2  ==  x + 0.5/(a+1e-9) (1 - cos(2 a x))
    s1 = xw + a1h_ref[...] * (1.0 - jnp.cos(a1t_ref[...] * xw))

    # im2col: stack the 7 dilated taps along channels -> one K = 7*C matmul.
    taps = [s1[:, H - pad + k * dilation: H - pad + k * dilation + Tt]
            for k in range(7)]
    stack = jnp.concatenate(taps, axis=0).astype(mm_dtype)      # (7C, Tt)
    y1 = jnp.dot(w1_ref[...], stack,
                 preferred_element_type=jnp.float32) + b1_ref[...]

    s2 = y1 + a2h_ref[...] * (1.0 - jnp.cos(a2t_ref[...] * y1))

    y2 = jnp.dot(w2_ref[...], s2.astype(mm_dtype),
                 preferred_element_type=jnp.float32) + b2_ref[...]

    # Residual (the PyTorch crop is a no-op since T_out == T).
    o_ref[...] = (xw[:, H:H + Tt] + y2).astype(o_ref.dtype)


# ----------------------------------------------------------------------------
# Wrapper
# ----------------------------------------------------------------------------
def _pick_t_tile(T, t_tile):
    if T % 128 != 0:
        # TODO(synk): pad T up to a multiple of 128 for lane-dense stores; for
        # now fall back to a single (possibly masked-store) tile.
        return T
    best = 128
    cand = 128
    limit = min(T, max(t_tile, 128))
    while cand <= limit:
        if T % cand == 0:
            best = cand
        cand += 128
    return best


def residual_unit_pallas(x, params, *, dilation, t_tile=512,
                         matmul_dtype=jnp.bfloat16):
    """ResidualUnit forward.  x: (B, C, T) float32.  params: see init_params."""
    B, C, T = x.shape
    pad = (7 - 1) * dilation // 2
    assert pad <= _HALO, "dilation too large for the fixed 128-lane halo"

    Tt = _pick_t_tile(T, t_tile)
    nT = T // Tt
    W = Tt + 2 * _HALO
    mm = matmul_dtype

    # --- tiny parameter prep (hoisted per-channel constants, fused weights) --
    a1 = params["alpha1"].reshape(C, 1)
    a2 = params["alpha2"].reshape(C, 1)
    a1t, a1h = 2.0 * a1, 0.5 / (a1 + 1e-9)
    a2t, a2h = 2.0 * a2, 0.5 / (a2 + 1e-9)
    # (C_out, C_in, 7) -> (C_out, 7*C_in): column index = k*C_in + i.
    w1s = jnp.transpose(params["w1"], (0, 2, 1)).reshape(C, 7 * C).astype(mm)
    w2 = params["w2"][:, :, 0].astype(mm)
    b1 = params["b1"].reshape(C, 1)
    b2 = params["b2"].reshape(C, 1)

    kernel = functools.partial(_residual_unit_kernel, dilation=dilation,
                               pad=pad, n_t=nT, mm_dtype=mm)

    const = lambda b, t: (0, 0)
    return pl.pallas_call(
        kernel,
        out_shape=jax.ShapeDtypeStruct((B, C, T), x.dtype),
        grid=(B, nT),
        in_specs=[
            pl.BlockSpec(memory_space=pl.ANY),        # x stays in HBM
            pl.BlockSpec((C, 1), const),              # 2*alpha1
            pl.BlockSpec((C, 1), const),              # 0.5/(alpha1+eps)
            pl.BlockSpec((C, 7 * C), const),          # fused k=7 weight
            pl.BlockSpec((C, 1), const),              # b1
            pl.BlockSpec((C, 1), const),              # 2*alpha2
            pl.BlockSpec((C, 1), const),              # 0.5/(alpha2+eps)
            pl.BlockSpec((C, C), const),              # k=1 weight
            pl.BlockSpec((C, 1), const),              # b2
        ],
        out_specs=pl.BlockSpec((None, C, Tt), lambda b, t: (b, 0, t)),
        scratch_shapes=[
            pltpu.VMEM((2, C, W), x.dtype),           # double-buffered window
            pltpu.SemaphoreType.DMA((2,)),
        ],
        compiler_params=pltpu.CompilerParams(
            dimension_semantics=("parallel", "arbitrary")),
    )(x, a1t, a1h, w1s, b1, a2t, a2h, w2, b2)


# ----------------------------------------------------------------------------
# Deterministic parameter init (mirrors ResidualUnit.__init__ shapes)
# ----------------------------------------------------------------------------
def init_params(key, dim: int):
    k = jax.random.split(key, 8)

    def weight_norm(v, g):
        # torch weight_norm (dim=0): w = g * v / ||v||, norm over (in_ch, k).
        norm = jnp.sqrt(jnp.sum(v * v, axis=(1, 2), keepdims=True))
        return g * v / norm

    alpha1 = jax.random.uniform(k[0], (1, dim, 1), jnp.float32, 0.5, 1.5)
    alpha2 = jax.random.uniform(k[1], (1, dim, 1), jnp.float32, 0.5, 1.5)

    v1 = jax.random.normal(k[2], (dim, dim, 7), jnp.float32) * 0.1
    g1 = jax.random.uniform(k[3], (dim, 1, 1), jnp.float32, 0.5, 1.5)
    b1 = jax.random.normal(k[4], (dim,), jnp.float32) * 0.05

    v2 = jax.random.normal(k[5], (dim, dim, 1), jnp.float32) * 0.1
    g2 = jax.random.uniform(k[6], (dim, 1, 1), jnp.float32, 0.5, 1.5)
    b2 = jax.random.normal(k[7], (dim,), jnp.float32) * 0.05

    return {
        "alpha1": alpha1, "alpha2": alpha2,
        "w1": weight_norm(v1, g1),   # (C_out, C_in, 7)
        "b1": b1,                    # (C_out,)
        "w2": weight_norm(v2, g2),   # (C_out, C_in, 1)
        "b2": b2,                    # (C_out,)
    }


# ----------------------------------------------------------------------------
# Pure-JAX reference (for verification)
# ----------------------------------------------------------------------------
def residual_unit_ref(x, params, *, dilation, conv_dtype=jnp.float32):
    pad = (7 - 1) * dilation // 2

    def snake(v, alpha):
        return v + (1.0 / (alpha + 1e-9)) * jnp.sin(alpha * v) ** 2

    w1 = params["w1"].astype(conv_dtype)
    w2 = params["w2"].astype(conv_dtype)
    dn = lax.conv_dimension_numbers(x.shape, w1.shape, ("NCH", "OIH", "NCH"))

    s1 = snake(x, params["alpha1"])
    y1 = lax.conv_general_dilated(s1.astype(conv_dtype), w1, (1,), [(pad, pad)],
                                  rhs_dilation=(dilation,),
                                  dimension_numbers=dn,
                                  preferred_element_type=jnp.float32)
    y1 = y1 + params["b1"].reshape(1, -1, 1)
    s2 = snake(y1, params["alpha2"])
    y2 = lax.conv_general_dilated(s2.astype(conv_dtype), w2, (1,), [(0, 0)],
                                  dimension_numbers=dn,
                                  preferred_element_type=jnp.float32)
    y2 = y2 + params["b2"].reshape(1, -1, 1)
    p = (x.shape[-1] - y2.shape[-1]) // 2
    if p > 0:
        x = x[..., p:-p]
    return x + y2


# ----------------------------------------------------------------------------
if __name__ == "__main__":
    B, C, T = 2, 16, 384      # dim=16 is the ResidualUnit default; T % 128 == 0

    key = jax.random.PRNGKey(0)
    kx, kp = jax.random.split(key)
    x = jax.random.normal(kx, (B, C, T), jnp.float32)
    params = init_params(kp, C)

    # Exact f32 path vs the module math (tight tolerance).  T=384 / Tt=128
    # gives 3 tiles so first / interior / last halo paths are all exercised;
    # two dilations exercise different halo widths.
    for dilation in (1, 9):
        out = jax.block_until_ready(
            residual_unit_pallas(x, params, dilation=dilation, t_tile=128,
                                 matmul_dtype=jnp.float32))
        ref = jax.block_until_ready(
            residual_unit_ref(x, params, dilation=dilation,
                              conv_dtype=jnp.float32))
        np.testing.assert_allclose(np.asarray(out), np.asarray(ref),
                                   rtol=1e-4, atol=1e-4)

    # Mixed-precision fast path (bf16 MXU operands, f32 accumulate/elementwise)
    # vs a reference using the same operand precision.
    out = jax.block_until_ready(
        residual_unit_pallas(x, params, dilation=3, t_tile=128,
                             matmul_dtype=jnp.bfloat16))
    ref = jax.block_until_ready(
        residual_unit_ref(x, params, dilation=3, conv_dtype=jnp.bfloat16))
    np.testing.assert_allclose(np.asarray(out), np.asarray(ref),
                               rtol=1e-2, atol=1e-2)

    print("KERNEL_OK")
</pallas_src>

<mosaic_0001>
module attributes {stable_mosaic.version = 11 : i64} {
  func.func @_residual_unit_kernel(%arg0: i32, %arg1: i32, %arg2: memref<2x16x384xf32, #tpu.memory_space<any>>, %arg3: memref<16x1xf32, #tpu.memory_space<vmem>>, %arg4: memref<16x1xf32, #tpu.memory_space<vmem>>, %arg5: memref<16x112xf32, #tpu.memory_space<vmem>>, %arg6: memref<16x1xf32, #tpu.memory_space<vmem>>, %arg7: memref<16x1xf32, #tpu.memory_space<vmem>>, %arg8: memref<16x1xf32, #tpu.memory_space<vmem>>, %arg9: memref<16x16xf32, #tpu.memory_space<vmem>>, %arg10: memref<16x1xf32, #tpu.memory_space<vmem>>, %arg11: memref<1x16x128xf32, #tpu.memory_space<vmem>>, %arg12: memref<2x16x384xf32, #tpu.memory_space<vmem>>, %arg13: memref<2x!tpu.dma_semaphore, #tpu.memory_space<semaphore_mem>>) attributes {dimension_semantics = [#tpu.dimension_semantics<parallel>, #tpu.dimension_semantics<arbitrary>], iteration_bounds = array<i64: 2, 3>, scalar_prefetch = 0 : i64, scratch_operands = 2 : i64, tpu.core_type = #tpu.core_type<tc>, window_params = [{}, {pipeline_mode = #tpu.pipeline_mode<synchronous>, transform_indices = @transform_1, window_bounds = array<i64: 16, 1>}, {pipeline_mode = #tpu.pipeline_mode<synchronous>, transform_indices = @transform_2, window_bounds = array<i64: 16, 1>}, {pipeline_mode = #tpu.pipeline_mode<synchronous>, transform_indices = @transform_3, window_bounds = array<i64: 16, 112>}, {pipeline_mode = #tpu.pipeline_mode<synchronous>, transform_indices = @transform_4, window_bounds = array<i64: 16, 1>}, {pipeline_mode = #tpu.pipeline_mode<synchronous>, transform_indices = @transform_5, window_bounds = array<i64: 16, 1>}, {pipeline_mode = #tpu.pipeline_mode<synchronous>, transform_indices = @transform_6, window_bounds = array<i64: 16, 1>}, {pipeline_mode = #tpu.pipeline_mode<synchronous>, transform_indices = @transform_7, window_bounds = array<i64: 16, 16>}, {pipeline_mode = #tpu.pipeline_mode<synchronous>, transform_indices = @transform_8, window_bounds = array<i64: 16, 1>}, {transform_indices = @transform_9, window_bounds = array<i64: 1, 16, 128>}]} {
    %c2_i32 = arith.constant 2 : i32
    %c0_i32 = arith.constant 0 : i32
    %0 = arith.cmpi eq, %c2_i32, %c0_i32 : i32
    %c1_i32 = arith.constant 1 : i32
    %1 = arith.select %0, %c1_i32, %c2_i32 : i32
    %2 = arith.remsi %arg1, %1 : i32
    %c0_i32_0 = arith.constant 0 : i32
    %3 = arith.cmpi ne, %2, %c0_i32_0 : i32
    %c0_i32_1 = arith.constant 0 : i32
    %4 = arith.cmpi slt, %2, %c0_i32_1 : i32
    %c0_i32_2 = arith.constant 0 : i32
    %5 = arith.cmpi slt, %1, %c0_i32_2 : i32
    %6 = arith.xori %4, %5 : i1
    %7 = arith.andi %6, %3 : i1
    %8 = arith.addi %2, %1 : i32
    %9 = arith.select %7, %8, %2 : i32
    %c0_i32_3 = arith.constant 0 : i32
    %10 = arith.cmpi eq, %arg1, %c0_i32_3 : i32
    %11 = arith.extui %10 : i1 to i32
    %c0_i32_4 = arith.constant 0 : i32
    %12 = arith.cmpi ne, %11, %c0_i32_4 : i32
    scf.if %12 {
      %c0_i32_41 = arith.constant 0 : i32
      %80 = arith.cmpi eq, %arg1, %c0_i32_41 : i32
      %81 = arith.extui %80 : i1 to i32
      %c0_i32_42 = arith.constant 0 : i32
      %82 = arith.cmpi ne, %81, %c0_i32_42 : i32
      scf.if %82 {
        %c0_i32_48 = arith.constant 0 : i32
        %c0_i32_49 = arith.constant 0 : i32
        %91 = tpu.memref_slice %arg2[%arg0, %c0_i32_48, %c0_i32_49] : memref<2x16x384xf32, #tpu.memory_space<any>> -> memref<1x16x256xf32, #tpu.memory_space<any>>
        %92 = tpu.memref_squeeze %91 : memref<1x16x256xf32, #tpu.memory_space<any>> -> memref<16x256xf32, #tpu.memory_space<any>>
        %c0_i32_50 = arith.constant 0 : i32
        %c128_i32 = arith.constant 128 : i32
        %93 = tpu.memref_slice %arg12[%9, %c0_i32_50, %c128_i32] : memref<2x16x384xf32, #tpu.memory_space<vmem>> -> memref<1x16x256xf32, #tpu.memory_space<vmem>>
        %94 = tpu.memref_squeeze %93 : memref<1x16x256xf32, #tpu.memory_space<vmem>> -> memref<16x256xf32, #tpu.memory_space<vmem>>
        %95 = tpu.memref_slice %arg13[%9] : memref<2x!tpu.dma_semaphore, #tpu.memory_space<semaphore_mem>> -> memref<1x!tpu.dma_semaphore, #tpu.memory_space<semaphore_mem>>
        %96 = tpu.memref_squeeze %95 : memref<1x!tpu.dma_semaphore, #tpu.memory_space<semaphore_mem>> -> memref<!tpu.dma_semaphore, #tpu.memory_space<semaphore_mem>>
        tpu.enqueue_dma source(%92 : memref<16x256xf32, #tpu.memory_space<any>>) target(%94 : memref<16x256xf32, #tpu.memory_space<vmem>>) target_semaphore(%96 : memref<!tpu.dma_semaphore, #tpu.memory_space<semaphore_mem>>)
      } else {
      }
      %c2_i32_43 = arith.constant 2 : i32
      %83 = arith.cmpi eq, %arg1, %c2_i32_43 : i32
      %84 = arith.extui %83 : i1 to i32
      %c0_i32_44 = arith.constant 0 : i32
      %85 = arith.cmpi ne, %84, %c0_i32_44 : i32
      scf.if %85 {
        %c128_i32 = arith.constant 128 : i32
        %91 = arith.muli %arg1, %c128_i32 : i32
        %c128_i32_48 = arith.constant 128 : i32
        %92 = arith.subi %91, %c128_i32_48 : i32
        %c0_i32_49 = arith.constant 0 : i32
        %93 = tpu.memref_slice %arg2[%arg0, %c0_i32_49, %92] : memref<2x16x384xf32, #tpu.memory_space<any>> -> memref<1x16x256xf32, #tpu.memory_space<any>>
        %94 = tpu.memref_squeeze %93 : memref<1x16x256xf32, #tpu.memory_space<any>> -> memref<16x256xf32, #tpu.memory_space<any>>
        %c0_i32_50 = arith.constant 0 : i32
        %c0_i32_51 = arith.constant 0 : i32
        %95 = tpu.memref_slice %arg12[%9, %c0_i32_50, %c0_i32_51] : memref<2x16x384xf32, #tpu.memory_space<vmem>> -> memref<1x16x256xf32, #tpu.memory_space<vmem>>
        %96 = tpu.memref_squeeze %95 : memref<1x16x256xf32, #tpu.memory_space<vmem>> -> memref<16x256xf32, #tpu.memory_space<vmem>>
        %97 = tpu.memref_slice %arg13[%9] : memref<2x!tpu.dma_semaphore, #tpu.memory_space<semaphore_mem>> -> memref<1x!tpu.dma_semaphore, #tpu.memory_space<semaphore_mem>>
        %98 = tpu.memref_squeeze %97 : memref<1x!tpu.dma_semaphore, #tpu.memory_space<semaphore_mem>> -> memref<!tpu.dma_semaphore, #tpu.memory_space<semaphore_mem>>
        tpu.enqueue_dma source(%94 : memref<16x256xf32, #tpu.memory_space<any>>) target(%96 : memref<16x256xf32, #tpu.memory_space<vmem>>) target_semaphore(%98 : memref<!tpu.dma_semaphore, #tpu.memory_space<semaphore_mem>>)
      } else {
      }
      %c0_i32_45 = arith.constant 0 : i32
      %86 = arith.cmpi sgt, %arg1, %c0_i32_45 : i32
      %c2_i32_46 = arith.constant 2 : i32
      %87 = arith.cmpi slt, %arg1, %c2_i32_46 : i32
      %88 = arith.andi %86, %87 : i1
      %89 = arith.extui %88 : i1 to i32
      %c0_i32_47 = arith.constant 0 : i32
      %90 = arith.cmpi ne, %89, %c0_i32_47 : i32
      scf.if %90 {
        %c128_i32 = arith.constant 128 : i32
        %91 = arith.muli %arg1, %c128_i32 : i32
        %c128_i32_48 = arith.constant 128 : i32
        %92 = arith.subi %91, %c128_i32_48 : i32
        %c0_i32_49 = arith.constant 0 : i32
        %93 = tpu.memref_slice %arg2[%arg0, %c0_i32_49, %92] : memref<2x16x384xf32, #tpu.memory_space<any>> -> memref<1x16x384xf32, #tpu.memory_space<any>>
        %94 = tpu.memref_squeeze %93 : memref<1x16x384xf32, #tpu.memory_space<any>> -> memref<16x384xf32, #tpu.memory_space<any>>
        %c0_i32_50 = arith.constant 0 : i32
        %c0_i32_51 = arith.constant 0 : i32
        %95 = tpu.memref_slice %arg12[%9, %c0_i32_50, %c0_i32_51] : memref<2x16x384xf32, #tpu.memory_space<vmem>> -> memref<1x16x384xf32, #tpu.memory_space<vmem>>
        %96 = tpu.memref_squeeze %95 : memref<1x16x384xf32, #tpu.memory_space<vmem>> -> memref<16x384xf32, #tpu.memory_space<vmem>>
        %97 = tpu.memref_slice %arg13[%9] : memref<2x!tpu.dma_semaphore, #tpu.memory_space<semaphore_mem>> -> memref<1x!tpu.dma_semaphore, #tpu.memory_space<semaphore_mem>>
        %98 = tpu.memref_squeeze %97 : memref<1x!tpu.dma_semaphore, #tpu.memory_space<semaphore_mem>> -> memref<!tpu.dma_semaphore, #tpu.memory_space<semaphore_mem>>
        tpu.enqueue_dma source(%94 : memref<16x384xf32, #tpu.memory_space<any>>) target(%96 : memref<16x384xf32, #tpu.memory_space<vmem>>) target_semaphore(%98 : memref<!tpu.dma_semaphore, #tpu.memory_space<semaphore_mem>>)
      } else {
      }
    } else {
    }
    %c1_i32_5 = arith.constant 1 : i32
    %13 = arith.addi %arg1, %c1_i32_5 : i32
    %c3_i32 = arith.constant 3 : i32
    %14 = arith.cmpi slt, %13, %c3_i32 : i32
    %15 = arith.extui %14 : i1 to i32
    %c0_i32_6 = arith.constant 0 : i32
    %16 = arith.cmpi ne, %15, %c0_i32_6 : i32
    scf.if %16 {
      %c1_i32_41 = arith.constant 1 : i32
      %80 = arith.addi %arg1, %c1_i32_41 : i32
      %c1_i32_42 = arith.constant 1 : i32
      %81 = arith.subi %c1_i32_42, %9 : i32
      %c0_i32_43 = arith.constant 0 : i32
      %82 = arith.cmpi eq, %80, %c0_i32_43 : i32
      %83 = arith.extui %82 : i1 to i32
      %c0_i32_44 = arith.constant 0 : i32
      %84 = arith.cmpi ne, %83, %c0_i32_44 : i32
      scf.if %84 {
        %c0_i32_50 = arith.constant 0 : i32
        %c0_i32_51 = arith.constant 0 : i32
        %93 = tpu.memref_slice %arg2[%arg0, %c0_i32_50, %c0_i32_51] : memref<2x16x384xf32, #tpu.memory_space<any>> -> memref<1x16x256xf32, #tpu.memory_space<any>>
        %94 = tpu.memref_squeeze %93 : memref<1x16x256xf32, #tpu.memory_space<any>> -> memref<16x256xf32, #tpu.memory_space<any>>
        %c0_i32_52 = arith.constant 0 : i32
        %c128_i32 = arith.constant 128 : i32
        %95 = tpu.memref_slice %arg12[%81, %c0_i32_52, %c128_i32] : memref<2x16x384xf32, #tpu.memory_space<vmem>> -> memref<1x16x256xf32, #tpu.memory_space<vmem>>
        %96 = tpu.memref_squeeze %95 : memref<1x16x256xf32, #tpu.memory_space<vmem>> -> memref<16x256xf32, #tpu.memory_space<vmem>>
        %97 = tpu.memref_slice %arg13[%81] : memref<2x!tpu.dma_semaphore, #tpu.memory_space<semaphore_mem>> -> memref<1x!tpu.dma_semaphore, #tpu.memory_space<semaphore_mem>>
        %98 = tpu.memref_squeeze %97 : memref<1x!tpu.dma_semaphore, #tpu.memory_space<semaphore_mem>> -> memref<!tpu.dma_semaphore, #tpu.memory_space<semaphore_mem>>
        tpu.enqueue_dma source(%94 : memref<16x256xf32, #tpu.memory_space<any>>) target(%96 : memref<16x256xf32, #tpu.memory_space<vmem>>) target_semaphore(%98 : memref<!tpu.dma_semaphore, #tpu.memory_space<semaphore_mem>>)
      } else {
      }
      %c2_i32_45 = arith.constant 2 : i32
      %85 = arith.cmpi eq, %80, %c2_i32_45 : i32
      %86 = arith.extui %85 : i1 to i32
      %c0_i32_46 = arith.constant 0 : i32
      %87 = arith.cmpi ne, %86, %c0_i32_46 : i32
      scf.if %87 {
        %c128_i32 = arith.constant 128 : i32
        %93 = arith.muli %80, %c128_i32 : i32
        %c128_i32_50 = arith.constant 128 : i32
        %94 = arith.subi %93, %c128_i32_50 : i32
        %c0_i32_51 = arith.constant 0 : i32
        %95 = tpu.memref_slice %arg2[%arg0, %c0_i32_51, %94] : memref<2x16x384xf32, #tpu.memory_space<any>> -> memref<1x16x256xf32, #tpu.memory_space<any>>
        %96 = tpu.memref_squeeze %95 : memref<1x16x256xf32, #tpu.memory_space<any>> -> memref<16x256xf32, #tpu.memory_space<any>>
        %c0_i32_52 = arith.constant 0 : i32
        %c0_i32_53 = arith.constant 0 : i32
        %97 = tpu.memref_slice %arg12[%81, %c0_i32_52, %c0_i32_53] : memref<2x16x384xf32, #tpu.memory_space<vmem>> -> memref<1x16x256xf32, #tpu.memory_space<vmem>>
        %98 = tpu.memref_squeeze %97 : memref<1x16x256xf32, #tpu.memory_space<vmem>> -> memref<16x256xf32, #tpu.memory_space<vmem>>
        %99 = tpu.memref_slice %arg13[%81] : memref<2x!tpu.dma_semaphore, #tpu.memory_space<semaphore_mem>> -> memref<1x!tpu.dma_semaphore, #tpu.memory_space<semaphore_mem>>
        %100 = tpu.memref_squeeze %99 : memref<1x!tpu.dma_semaphore, #tpu.memory_space<semaphore_mem>> -> memref<!tpu.dma_semaphore, #tpu.memory_space<semaphore_mem>>
        tpu.enqueue_dma source(%96 : memref<16x256xf32, #tpu.memory_space<any>>) target(%98 : memref<16x256xf32, #tpu.memory_space<vmem>>) target_semaphore(%100 : memref<!tpu.dma_semaphore, #tpu.memory_space<semaphore_mem>>)
      } else {
      }
      %c0_i32_47 = arith.constant 0 : i32
      %88 = arith.cmpi sgt, %80, %c0_i32_47 : i32
      %c2_i32_48 = arith.constant 2 : i32
      %89 = arith.cmpi slt, %80, %c2_i32_48 : i32
      %90 = arith.andi %88, %89 : i1
      %91 = arith.extui %90 : i1 to i32
      %c0_i32_49 = arith.constant 0 : i32
      %92 = arith.cmpi ne, %91, %c0_i32_49 : i32
      scf.if %92 {
        %c128_i32 = arith.constant 128 : i32
        %93 = arith.muli %80, %c128_i32 : i32
        %c128_i32_50 = arith.constant 128 : i32
        %94 = arith.subi %93, %c128_i32_50 : i32
        %c0_i32_51 = arith.constant 0 : i32
        %95 = tpu.memref_slice %arg2[%arg0, %c0_i32_51, %94] : memref<2x16x384xf32, #tpu.memory_space<any>> -> memref<1x16x384xf32, #tpu.memory_space<any>>
        %96 = tpu.memref_squeeze %95 : memref<1x16x384xf32, #tpu.memory_space<any>> -> memref<16x384xf32, #tpu.memory_space<any>>
        %c0_i32_52 = arith.constant 0 : i32
        %c0_i32_53 = arith.constant 0 : i32
        %97 = tpu.memref_slice %arg12[%81, %c0_i32_52, %c0_i32_53] : memref<2x16x384xf32, #tpu.memory_space<vmem>> -> memref<1x16x384xf32, #tpu.memory_space<vmem>>
        %98 = tpu.memref_squeeze %97 : memref<1x16x384xf32, #tpu.memory_space<vmem>> -> memref<16x384xf32, #tpu.memory_space<vmem>>
        %99 = tpu.memref_slice %arg13[%81] : memref<2x!tpu.dma_semaphore, #tpu.memory_space<semaphore_mem>> -> memref<1x!tpu.dma_semaphore, #tpu.memory_space<semaphore_mem>>
        %100 = tpu.memref_squeeze %99 : memref<1x!tpu.dma_semaphore, #tpu.memory_space<semaphore_mem>> -> memref<!tpu.dma_semaphore, #tpu.memory_space<semaphore_mem>>
        tpu.enqueue_dma source(%96 : memref<16x384xf32, #tpu.memory_space<any>>) target(%98 : memref<16x384xf32, #tpu.memory_space<vmem>>) target_semaphore(%100 : memref<!tpu.dma_semaphore, #tpu.memory_space<semaphore_mem>>)
      } else {
      }
    } else {
    }
    %c0_i32_7 = arith.constant 0 : i32
    %17 = arith.cmpi eq, %arg1, %c0_i32_7 : i32
    %18 = arith.extui %17 : i1 to i32
    %c0_i32_8 = arith.constant 0 : i32
    %19 = arith.cmpi ne, %18, %c0_i32_8 : i32
    scf.if %19 {
      %c0_i32_41 = arith.constant 0 : i32
      %c0_i32_42 = arith.constant 0 : i32
      %80 = tpu.memref_slice %arg2[%arg0, %c0_i32_41, %c0_i32_42] : memref<2x16x384xf32, #tpu.memory_space<any>> -> memref<1x16x256xf32, #tpu.memory_space<any>>
      %81 = tpu.memref_squeeze %80 : memref<1x16x256xf32, #tpu.memory_space<any>> -> memref<16x256xf32, #tpu.memory_space<any>>
      %c0_i32_43 = arith.constant 0 : i32
      %c128_i32 = arith.constant 128 : i32
      %82 = tpu.memref_slice %arg12[%9, %c0_i32_43, %c128_i32] : memref<2x16x384xf32, #tpu.memory_space<vmem>> -> memref<1x16x256xf32, #tpu.memory_space<vmem>>
      %83 = tpu.memref_squeeze %82 : memref<1x16x256xf32, #tpu.memory_space<vmem>> -> memref<16x256xf32, #tpu.memory_space<vmem>>
      %84 = tpu.memref_slice %arg13[%9] : memref<2x!tpu.dma_semaphore, #tpu.memory_space<semaphore_mem>> -> memref<1x!tpu.dma_semaphore, #tpu.memory_space<semaphore_mem>>
      %85 = tpu.memref_squeeze %84 : memref<1x!tpu.dma_semaphore, #tpu.memory_space<semaphore_mem>> -> memref<!tpu.dma_semaphore, #tpu.memory_space<semaphore_mem>>
      tpu.wait_dma2 semaphore(%85 : memref<!tpu.dma_semaphore, #tpu.memory_space<semaphore_mem>>) src(%81 : memref<16x256xf32, #tpu.memory_space<any>>) dst(%83 : memref<16x256xf32, #tpu.memory_space<vmem>>)
    } else {
    }
    %c2_i32_9 = arith.constant 2 : i32
    %20 = arith.cmpi eq, %arg1, %c2_i32_9 : i32
    %21 = arith.extui %20 : i1 to i32
    %c0_i32_10 = arith.constant 0 : i32
    %22 = arith.cmpi ne, %21, %c0_i32_10 : i32
    scf.if %22 {
      %c128_i32 = arith.constant 128 : i32
      %80 = arith.muli %arg1, %c128_i32 : i32
      %c128_i32_41 = arith.constant 128 : i32
      %81 = arith.subi %80, %c128_i32_41 : i32
      %c0_i32_42 = arith.constant 0 : i32
      %82 = tpu.memref_slice %arg2[%arg0, %c0_i32_42, %81] : memref<2x16x384xf32, #tpu.memory_space<any>> -> memref<1x16x256xf32, #tpu.memory_space<any>>
      %83 = tpu.memref_squeeze %82 : memref<1x16x256xf32, #tpu.memory_space<any>> -> memref<16x256xf32, #tpu.memory_space<any>>
      %c0_i32_43 = arith.constant 0 : i32
      %c0_i32_44 = arith.constant 0 : i32
      %84 = tpu.memref_slice %arg12[%9, %c0_i32_43, %c0_i32_44] : memref<2x16x384xf32, #tpu.memory_space<vmem>> -> memref<1x16x256xf32, #tpu.memory_space<vmem>>
      %85 = tpu.memref_squeeze %84 : memref<1x16x256xf32, #tpu.memory_space<vmem>> -> memref<16x256xf32, #tpu.memory_space<vmem>>
      %86 = tpu.memref_slice %arg13[%9] : memref<2x!tpu.dma_semaphore, #tpu.memory_space<semaphore_mem>> -> memref<1x!tpu.dma_semaphore, #tpu.memory_space<semaphore_mem>>
      %87 = tpu.memref_squeeze %86 : memref<1x!tpu.dma_semaphore, #tpu.memory_space<semaphore_mem>> -> memref<!tpu.dma_semaphore, #tpu.memory_space<semaphore_mem>>
      tpu.wait_dma2 semaphore(%87 : memref<!tpu.dma_semaphore, #tpu.memory_space<semaphore_mem>>) src(%83 : memref<16x256xf32, #tpu.memory_space<any>>) dst(%85 : memref<16x256xf32, #tpu.memory_space<vmem>>)
    } else {
    }
    %c0_i32_11 = arith.constant 0 : i32
    %23 = arith.cmpi sgt, %arg1, %c0_i32_11 : i32
    %c2_i32_12 = arith.constant 2 : i32
    %24 = arith.cmpi slt, %arg1, %c2_i32_12 : i32
    %25 = arith.andi %23, %24 : i1
    %26 = arith.extui %25 : i1 to i32
    %c0_i32_13 = arith.constant 0 : i32
    %27 = arith.cmpi ne, %26, %c0_i32_13 : i32
    scf.if %27 {
      %c128_i32 = arith.constant 128 : i32
      %80 = arith.muli %arg1, %c128_i32 : i32
      %c128_i32_41 = arith.constant 128 : i32
      %81 = arith.subi %80, %c128_i32_41 : i32
      %c0_i32_42 = arith.constant 0 : i32
      %82 = tpu.memref_slice %arg2[%arg0, %c0_i32_42, %81] : memref<2x16x384xf32, #tpu.memory_space<any>> -> memref<1x16x384xf32, #tpu.memory_space<any>>
      %83 = tpu.memref_squeeze %82 : memref<1x16x384xf32, #tpu.memory_space<any>> -> memref<16x384xf32, #tpu.memory_space<any>>
      %c0_i32_43 = arith.constant 0 : i32
      %c0_i32_44 = arith.constant 0 : i32
      %84 = tpu.memref_slice %arg12[%9, %c0_i32_43, %c0_i32_44] : memref<2x16x384xf32, #tpu.memory_space<vmem>> -> memref<1x16x384xf32, #tpu.memory_space<vmem>>
      %85 = tpu.memref_squeeze %84 : memref<1x16x384xf32, #tpu.memory_space<vmem>> -> memref<16x384xf32, #tpu.memory_space<vmem>>
      %86 = tpu.memref_slice %arg13[%9] : memref<2x!tpu.dma_semaphore, #tpu.memory_space<semaphore_mem>> -> memref<1x!tpu.dma_semaphore, #tpu.memory_space<semaphore_mem>>
      %87 = tpu.memref_squeeze %86 : memref<1x!tpu.dma_semaphore, #tpu.memory_space<semaphore_mem>> -> memref<!tpu.dma_semaphore, #tpu.memory_space<semaphore_mem>>
      tpu.wait_dma2 semaphore(%87 : memref<!tpu.dma_semaphore, #tpu.memory_space<semaphore_mem>>) src(%83 : memref<16x384xf32, #tpu.memory_space<any>>) dst(%85 : memref<16x384xf32, #tpu.memory_space<vmem>>)
    } else {
    }
    %c0_i32_14 = arith.constant 0 : i32
    %28 = arith.cmpi eq, %arg1, %c0_i32_14 : i32
    %29 = arith.extui %28 : i1 to i32
    %c0_i32_15 = arith.constant 0 : i32
    %30 = arith.cmpi ne, %29, %c0_i32_15 : i32
    scf.if %30 {
      %cst_41 = arith.constant 0.000000e+00 : f32
      %80 = vector.broadcast %cst_41 : f32 to vector<16x128xf32>
      %c0_42 = arith.constant 0 : index
      %c0_43 = arith.constant 0 : index
      %c0_44 = arith.constant 0 : index
      %81 = vector.load %arg12[%c0_42, %c0_43, %c0_44] : memref<2x16x384xf32, #tpu.memory_space<vmem>>, vector<1x16x128xf32>
      %82 = vector.shape_cast %81 : vector<1x16x128xf32> to vector<16x128xf32>
      %83 = vector.shape_cast %80 : vector<16x128xf32> to vector<1x16x128xf32>
      tpu.vector_store %arg12[%c0_42, %c0_43, %c0_44], %83 {strides = array<i32>} : memref<2x16x384xf32, #tpu.memory_space<vmem>>, vector<1x16x128xf32>,
    } else {
    }
    %c2_i32_16 = arith.constant 2 : i32
    %31 = arith.cmpi eq, %arg1, %c2_i32_16 : i32
    %32 = arith.extui %31 : i1 to i32
    %c0_i32_17 = arith.constant 0 : i32
    %33 = arith.cmpi ne, %32, %c0_i32_17 : i32
    scf.if %33 {
      %cst_41 = arith.constant 0.000000e+00 : f32
      %80 = vector.broadcast %cst_41 : f32 to vector<16x128xf32>
      %c0_42 = arith.constant 0 : index
      %c0_43 = arith.constant 0 : index
      %c256 = arith.constant 256 : index
      %81 = vector.load %arg12[%c0_42, %c0_43, %c256] : memref<2x16x384xf32, #tpu.memory_space<vmem>>, vector<1x16x128xf32>
      %82 = vector.shape_cast %81 : vector<1x16x128xf32> to vector<16x128xf32>
      %83 = vector.shape_cast %80 : vector<16x128xf32> to vector<1x16x128xf32>
      tpu.vector_store %arg12[%c0_42, %c0_43, %c256], %83 {strides = array<i32>} : memref<2x16x384xf32, #tpu.memory_space<vmem>>, vector<1x16x128xf32>,
    } else {
    }
    %34 = arith.index_cast %9 : i32 to index
    %c0 = arith.constant 0 : index
    %c0_18 = arith.constant 0 : index
    %35 = vector.load %arg12[%34, %c0, %c0_18] : memref<2x16x384xf32, #tpu.memory_space<vmem>>, vector<1x16x384xf32>
    %36 = vector.shape_cast %35 : vector<1x16x384xf32> to vector<16x384xf32>
    %c0_19 = arith.constant 0 : index
    %c0_20 = arith.constant 0 : index
    %37 = vector.load %arg4[%c0_19, %c0_20] : memref<16x1xf32, #tpu.memory_space<vmem>>, vector<16x1xf32>
    %c0_21 = arith.constant 0 : index
    %c0_22 = arith.constant 0 : index
    %38 = vector.load %arg3[%c0_21, %c0_22] : memref<16x1xf32, #tpu.memory_space<vmem>>, vector<16x1xf32>
    %39 = vector.broadcast %38 : vector<16x1xf32> to vector<16x384xf32>
    %40 = arith.mulf %39, %36 : vector<16x384xf32>
    %41 = math.cos %40 : vector<16x384xf32>
    %cst = arith.constant 1.000000e+00 : f32
    %42 = vector.broadcast %cst : f32 to vector<16x384xf32>
    %43 = arith.subf %42, %41 : vector<16x384xf32>
    %44 = vector.broadcast %37 : vector<16x1xf32> to vector<16x384xf32>
    %45 = arith.mulf %44, %43 : vector<16x384xf32>
    %46 = arith.addf %36, %45 : vector<16x384xf32>
    %47 = vector.extract_strided_slice %46 {offsets = [0, 125], sizes = [16, 128], strides = [1, 1]} : vector<16x384xf32> to vector<16x128xf32>
    %48 = vector.extract_strided_slice %46 {offsets = [0, 126], sizes = [16, 128], strides = [1, 1]} : vector<16x384xf32> to vector<16x128xf32>
    %49 = vector.extract_strided_slice %46 {offsets = [0, 127], sizes = [16, 128], strides = [1, 1]} : vector<16x384xf32> to vector<16x128xf32>
    %50 = vector.extract_strided_slice %46 {offsets = [0, 128], sizes = [16, 128], strides = [1, 1]} : vector<16x384xf32> to vector<16x128xf32>
    %51 = vector.extract_strided_slice %46 {offsets = [0, 129], sizes = [16, 128], strides = [1, 1]} : vector<16x384xf32> to vector<16x128xf32>
    %52 = vector.extract_strided_slice %46 {offsets = [0, 130], sizes = [16, 128], strides = [1, 1]} : vector<16x384xf32> to vector<16x128xf32>
    %53 = vector.extract_strided_slice %46 {offsets = [0, 131], sizes = [16, 128], strides = [1, 1]} : vector<16x384xf32> to vector<16x128xf32>
    %54 = tpu.concatenate %47, %48, %49, %50, %51, %52, %53 in 0 : vector<16x128xf32>, vector<16x128xf32>, vector<16x128xf32>, vector<16x128xf32>, vector<16x128xf32>, vector<16x128xf32>, vector<16x128xf32> -> vector<112x128xf32>
    %c0_23 = arith.constant 0 : index
    %c0_24 = arith.constant 0 : index
    %55 = vector.load %arg5[%c0_23, %c0_24] : memref<16x112xf32, #tpu.memory_space<vmem>>, vector<16x112xf32>
    %cst_25 = arith.constant dense<0.000000e+00> : vector<16x128xf32>
    %56 = tpu.matmul %55, %54, %cst_25 {dimension_numbers = #tpu.dot_dimension_numbers<[1], [0], [0], [1], [0, 0, 1, 1], [], []>} : vector<16x112xf32>, vector<112x128xf32>, vector<16x128xf32> -> vector<16x128xf32>
    %c0_26 = arith.constant 0 : index
    %c0_27 = arith.constant 0 : index
    %57 = vector.load %arg6[%c0_26, %c0_27] : memref<16x1xf32, #tpu.memory_space<vmem>>, vector<16x1xf32>
    %58 = vector.broadcast %57 : vector<16x1xf32> to vector<16x128xf32>
    %59 = arith.addf %56, %58 : vector<16x128xf32>
    %c0_28 = arith.constant 0 : index
    %c0_29 = arith.constant 0 : index
    %60 = vector.load %arg8[%c0_28, %c0_29] : memref<16x1xf32, #tpu.memory_space<vmem>>, vector<16x1xf32>
    %c0_30 = arith.constant 0 : index
    %c0_31 = arith.constant 0 : index
    %61 = vector.load %arg7[%c0_30, %c0_31] : memref<16x1xf32, #tpu.memory_space<vmem>>, vector<16x1xf32>
    %62 = vector.broadcast %61 : vector<16x1xf32> to vector<16x128xf32>
    %63 = arith.mulf %62, %59 : vector<16x128xf32>
    %64 = math.cos %63 : vector<16x128xf32>
    %cst_32 = arith.constant 1.000000e+00 : f32
    %65 = vector.broadcast %cst_32 : f32 to vector<16x128xf32>
    %66 = arith.subf %65, %64 : vector<16x128xf32>
    %67 = vector.broadcast %60 : vector<16x1xf32> to vector<16x128xf32>
    %68 = arith.mulf %67, %66 : vector<16x128xf32>
    %69 = arith.addf %59, %68 : vector<16x128xf32>
    %c0_33 = arith.constant 0 : index
    %c0_34 = arith.constant 0 : index
    %70 = vector.load %arg9[%c0_33, %c0_34] : memref<16x16xf32, #tpu.memory_space<vmem>>, vector<16x16xf32>
    %cst_35 = arith.constant dense<0.000000e+00> : vector<16x128xf32>
    %71 = tpu.matmul %70, %69, %cst_35 {dimension_numbers = #tpu.dot_dimension_numbers<[1], [0], [0], [1], [0, 0, 1, 1], [], []>} : vector<16x16xf32>, vector<16x128xf32>, vector<16x128xf32> -> vector<16x128xf32>
    %c0_36 = arith.constant 0 : index
    %c0_37 = arith.constant 0 : index
    %72 = vector.load %arg10[%c0_36, %c0_37] : memref<16x1xf32, #tpu.memory_space<vmem>>, vector<16x1xf32>
    %73 = vector.broadcast %72 : vector<16x1xf32> to vector<16x128xf32>
    %74 = arith.addf %71, %73 : vector<16x128xf32>
    %75 = vector.extract_strided_slice %36 {offsets = [0, 128], sizes = [16, 128], strides = [1, 1]} : vector<16x384xf32> to vector<16x128xf32>
    %76 = arith.addf %75, %74 : vector<16x128xf32>
    %c0_38 = arith.constant 0 : index
    %c0_39 = arith.constant 0 : index
    %c0_40 = arith.constant 0 : index
    %77 = vector.load %arg11[%c0_38, %c0_39, %c0_40] : memref<1x16x128xf32, #tpu.memory_space<vmem>>, vector<1x16x128xf32>
    %78 = vector.shape_cast %77 : vector<1x16x128xf32> to vector<16x128xf32>
    %79 = vector.shape_cast %76 : vector<16x128xf32> to vector<1x16x128xf32>
    tpu.vector_store %arg11[%c0_38, %c0_39, %c0_40], %79 {strides = array<i32>} : memref<1x16x128xf32, #tpu.memory_space<vmem>>, vector<1x16x128xf32>,
    return
  }
  func.func @transform_1(%arg0: i32, %arg1: i32) -> (i32, i32) {
    %c0_i32 = arith.constant 0 : i32
    %c0_i32_0 = arith.constant 0 : i32
    %c0_i32_1 = arith.constant 0 : i32
    return %c0_i32, %c0_i32_0 : i32, i32
  }
  func.func @transform_2(%arg0: i32, %arg1: i32) -> (i32, i32) {
    %c0_i32 = arith.constant 0 : i32
    %c0_i32_0 = arith.constant 0 : i32
    %c0_i32_1 = arith.constant 0 : i32
    return %c0_i32, %c0_i32_0 : i32, i32
  }
  func.func @transform_3(%arg0: i32, %arg1: i32) -> (i32, i32) {
    %c0_i32 = arith.constant 0 : i32
    %c0_i32_0 = arith.constant 0 : i32
    %c0_i32_1 = arith.constant 0 : i32
    return %c0_i32, %c0_i32_0 : i32, i32
  }
  func.func @transform_4(%arg0: i32, %arg1: i32) -> (i32, i32) {
    %c0_i32 = arith.constant 0 : i32
    %c0_i32_0 = arith.constant 0 : i32
    %c0_i32_1 = arith.constant 0 : i32
    return %c0_i32, %c0_i32_0 : i32, i32
  }
  func.func @transform_5(%arg0: i32, %arg1: i32) -> (i32, i32) {
    %c0_i32 = arith.constant 0 : i32
    %c0_i32_0 = arith.constant 0 : i32
    %c0_i32_1 = arith.constant 0 : i32
    return %c0_i32, %c0_i32_0 : i32, i32
  }
  func.func @transform_6(%arg0: i32, %arg1: i32) -> (i32, i32) {
    %c0_i32 = arith.constant 0 : i32
    %c0_i32_0 = arith.constant 0 : i32
    %c0_i32_1 = arith.constant 0 : i32
    return %c0_i32, %c0_i32_0 : i32, i32
  }
  func.func @transform_7(%arg0: i32, %arg1: i32) -> (i32, i32) {
    %c0_i32 = arith.constant 0 : i32
    %c0_i32_0 = arith.constant 0 : i32
    %c0_i32_1 = arith.constant 0 : i32
    return %c0_i32, %c0_i32_0 : i32, i32
  }
  func.func @transform_8(%arg0: i32, %arg1: i32) -> (i32, i32) {
    %c0_i32 = arith.constant 0 : i32
    %c0_i32_0 = arith.constant 0 : i32
    %c0_i32_1 = arith.constant 0 : i32
    return %c0_i32, %c0_i32_0 : i32, i32
  }
  func.func @transform_9(%arg0: i32, %arg1: i32) -> (i32, i32, i32) {
    %c0_i32 = arith.constant 0 : i32
    %c0_i32_0 = arith.constant 0 : i32
    return %arg0, %c0_i32, %arg1 : i32, i32, i32
  }
}

</mosaic_0001>

<llo_original>
// kernel: tpu_custom_call.1
$region0: #{tpu_custom_call.1}
  #allocation0 [shape = 'u32[]', space=smem, size = 0x4, offset = 0x4, fixed_abs, tag = 'smem constant byte address 0x4 - core index']
  #allocation1 [shape = 'u32[144,128]{1,0:T(1,128)}', space=vmem, size = 0x12000, scoped, tag = 'internal scratch']
  #allocation2 [shape = 'f32[2,16,384]{2,1,0:T(8,128)}', space=vmem, size = 0xc000, scoped, tag = 'scratch operand']
  #allocation3 [shape = 's32[2]{0}', space=sflag, size = 0x8, scoped, tag = 'scratch operand']
  #allocation6 [shape = 's32[]', space=sflag, size = 0x4, offset = 0, fixed_abs, tag = 'sflag constant byte address 0x0 - dummy sync flag']
  #allocation7 [shape = 's32[]', space=sflag, size = 0x4, offset = 0, fixed_abs, tag = 'sflag constant byte address 0x0 - dummy sync flag']
  #allocation8 [shape = 's32[]', space=sflag, size = 0x4, offset = 0, fixed_abs, tag = 'sflag constant byte address 0x0 - dummy sync flag']
  #allocation9 [shape = 's32[]', space=sflag, size = 0x4, offset = 0, fixed_abs, tag = 'sflag constant byte address 0x0 - dummy sync flag']
  #allocation10 [shape = 's32[]', space=sflag, size = 0x4, offset = 0, fixed_abs, tag = 'sflag constant byte address 0x0 - dummy sync flag']
  #allocation11 [shape = 's32[]', space=sflag, size = 0x4, offset = 0, fixed_abs, tag = 'sflag constant byte address 0x0 - dummy sync flag']
  %s0 = inlined_call_operand.vmem [shape: f32[2,16,384], index: 0, kind: input, shape index: {}]
  %s1 = inlined_call_operand.vmem [shape: f32[16,1], index: 1, kind: input, shape index: {}]
  %s2 = inlined_call_operand.vmem [shape: f32[16,1], index: 2, kind: input, shape index: {}]
  %s3 = inlined_call_operand.vmem [shape: f32[16,112], index: 3, kind: input, shape index: {}]
  %s4 = inlined_call_operand.vmem [shape: f32[16,1], index: 4, kind: input, shape index: {}]
  %s5 = inlined_call_operand.vmem [shape: f32[16,1], index: 5, kind: input, shape index: {}]
  %s6 = inlined_call_operand.vmem [shape: f32[16,1], index: 6, kind: input, shape index: {}]
  %s7 = inlined_call_operand.vmem [shape: f32[16,16], index: 7, kind: input, shape index: {}]
  %s8 = inlined_call_operand.vmem [shape: f32[16,1], index: 8, kind: input, shape index: {}]
  %s9 = inlined_call_operand.hbm [shape: f32[2,16,384], index: 9, kind: output, shape index: {}]
  %s10 = sld [smem:[#allocation0]]
  $region317: #{tpu_custom_call.1} parent=0
    _
  %s12 = ssub.s32 1, %s10
  %s13 = scalar_select 0, %s12, %s10
  $region1: #{tpu_custom_call.1} parent=0
    #allocation4 [shape = 'u8[16384]{0}', space=vmem, size = 0x4000, scoped, tag = 'output window, operand 0']
    #allocation5 [shape = 's32[2]{0}', space=sflag, size = 0x8, scoped, tag = 'scoped memory for tpu_custom_call.1']
    %14 = vsyncpa [#allocation5], 0
    %s15 = scalar_lea.sflag [#allocation5], 1
    %16 = vsyncpa %s15, 0
    loop: start=0, step=1, limit=8
    $region2: #{tpu_custom_call.1} parent=1 // loop_pre_header
      _
    $region3: #{tpu_custom_call.1} parent=1 // loop_header
      %s18 = sphi 0, %s22
      %p19 = scmp.ge.s32.totalorder %s18, 8
      %s25 = sphi 0, %s37
      %s26 = sphi 0, %s33
      %s27 = sphi 0, %s25
      %s28 = sphi 0, %s26
      %s29 = sphi 0, %s27
      %s30 = sphi 0, %s28
      %s38 = sphi 0, %s38
      %s40 = sphi 0, %s38
      %s41 = sphi 0, %s40
      %s55 = sphi 0, %s41
      %s59 = sphi 0, %s59
      %s61 = sphi 0, %s59
      %s62 = sphi 0, %s61
      %s76 = sphi 0, %s62
      %s80 = sphi 0, %s80
      %s82 = sphi 0, %s80
      %s83 = sphi 0, %s82
      %s97 = sphi 0, %s83
      %s101 = sphi 0, %s101
      %s103 = sphi 0, %s101
      %s104 = sphi 0, %s103
      %s118 = sphi 0, %s104
      %s122 = sphi 0, %s122
      %s124 = sphi 0, %s122
      %s125 = sphi 0, %s124
      %s139 = sphi 0, %s125
      %s143 = sphi 0, %s143
      %s145 = sphi 0, %s143
      %s146 = sphi 0, %s145
      %s160 = sphi 0, %s146
      %s164 = sphi 0, %s164
      %s166 = sphi 0, %s164
      %s167 = sphi 0, %s166
      %s181 = sphi 0, %s167
      %s185 = sphi 0, %s185
      %s187 = sphi 0, %s185
      %s188 = sphi 0, %s187
      %s202 = sphi 0, %s188
      %s210 = sphi 0, %s212
      %s213 = sphi 0, %s210
      %s214 = sphi 0, %s213
      %s230 = sphi 0, %s214
    $region4: #{tpu_custom_call.1} parent=1 // loop_header_branch
      %21 = sbr.rel (%p19) target = $region8
    $region5: #{tpu_custom_call.1} parent=1 // loop_body
      %s23 = ssub.s32 %s18, 1
      %s24 = ssub.s32 %s18, 2
      %s31 = sadd.s32 1, %s26
      %p32 = scmp.ge.s32.totalorder %s31, 3
      %s33 = scalar_select %p32, 0, %s31
      %s34 = sadd.s32 1, %s25
      %s35 = scalar_select %p32, %s34, %s25
      %p36 = scmp.ge.s32.totalorder %s35, 2
      %s37 = scalar_select %p36, 0, %s35
      %s39 = sadd.s32 %s38, 1
      %p42 = scmp.eq.s32.totalorder %s18, 5
      %p43 = scmp.ne.s32.totalorder %s38, %s40
      %p44 = scmp.eq.s32.totalorder %s18, 0
      %p45 = por %p43, %p44
      %p46 = scmp.ne.s32.totalorder %s38, %s40
      %p47 = scmp.eq.s32.totalorder %s23, 5
      %p48 = por %p46, %p47
      %p49 = scmp.ne.s32.totalorder %s40, %s41
      %p50 = scmp.eq.s32.totalorder %s23, 0
      %p51 = por %p49, %p50
      %p52 = scmp.ne.s32.totalorder %s40, %s41
      %p53 = scmp.eq.s32.totalorder %s24, 5
      %p54 = por %p52, %p53
      %p56 = scmp.ne.s32.totalorder %s41, %s55
      %p57 = scmp.eq.s32.totalorder %s24, 0
      %p58 = por %p56, %p57
      %s60 = sadd.s32 %s59, 1
      %p63 = scmp.eq.s32.totalorder %s18, 5
      %p64 = scmp.ne.s32.totalorder %s59, %s61
      %p65 = scmp.eq.s32.totalorder %s18, 0
      %p66 = por %p64, %p65
      %p67 = scmp.ne.s32.totalorder %s59, %s61
      %p68 = scmp.eq.s32.totalorder %s23, 5
      %p69 = por %p67, %p68
      %p70 = scmp.ne.s32.totalorder %s61, %s62
      %p71 = scmp.eq.s32.totalorder %s23, 0
      %p72 = por %p70, %p71
      %p73 = scmp.ne.s32.totalorder %s61, %s62
      %p74 = scmp.eq.s32.totalorder %s24, 5
      %p75 = por %p73, %p74
      %p77 = scmp.ne.s32.totalorder %s62, %s76
      %p78 = scmp.eq.s32.totalorder %s24, 0
      %p79 = por %p77, %p78
      %s81 = sadd.s32 %s80, 1
      %p84 = scmp.eq.s32.totalorder %s18, 5
      %p85 = scmp.ne.s32.totalorder %s80, %s82
      %p86 = scmp.eq.s32.totalorder %s18, 0
      %p87 = por %p85, %p86
      %p88 = scmp.ne.s32.totalorder %s80, %s82
      %p89 = scmp.eq.s32.totalorder %s23, 5
      %p90 = por %p88, %p89
      %p91 = scmp.ne.s32.totalorder %s82, %s83
      %p92 = scmp.eq.s32.totalorder %s23, 0
      %p93 = por %p91, %p92
      %p94 = scmp.ne.s32.totalorder %s82, %s83
      %p95 = scmp.eq.s32.totalorder %s24, 5
      %p96 = por %p94, %p95
      %p98 = scmp.ne.s32.totalorder %s83, %s97
      %p99 = scmp.eq.s32.totalorder %s24, 0
      %p100 = por %p98, %p99
      %s102 = sadd.s32 %s101, 1
      %p105 = scmp.eq.s32.totalorder %s18, 5
      %p106 = scmp.ne.s32.totalorder %s101, %s103
      %p107 = scmp.eq.s32.totalorder %s18, 0
      %p108 = por %p106, %p107
      %p109 = scmp.ne.s32.totalorder %s101, %s103
      %p110 = scmp.eq.s32.totalorder %s23, 5
      %p111 = por %p109, %p110
      %p112 = scmp.ne.s32.totalorder %s103, %s104
      %p113 = scmp.eq.s32.totalorder %s23, 0
      %p114 = por %p112, %p113
      %p115 = scmp.ne.s32.totalorder %s103, %s104
      %p116 = scmp.eq.s32.totalorder %s24, 5
      %p117 = por %p115, %p116
      %p119 = scmp.ne.s32.totalorder %s104, %s118
      %p120 = scmp.eq.s32.totalorder %s24, 0
      %p121 = por %p119, %p120
      %s123 = sadd.s32 %s122, 1
      %p126 = scmp.eq.s32.totalorder %s18, 5
      %p127 = scmp.ne.s32.totalorder %s122, %s124
      %p128 = scmp.eq.s32.totalorder %s18, 0
      %p129 = por %p127, %p128
      %p130 = scmp.ne.s32.totalorder %s122, %s124
      %p131 = scmp.eq.s32.totalorder %s23, 5
      %p132 = por %p130, %p131
      %p133 = scmp.ne.s32.totalorder %s124, %s125
      %p134 = scmp.eq.s32.totalorder %s23, 0
      %p135 = por %p133, %p134
      %p136 = scmp.ne.s32.totalorder %s124, %s125
      %p137 = scmp.eq.s32.totalorder %s24, 5
      %p138 = por %p136, %p137
      %p140 = scmp.ne.s32.totalorder %s125, %s139
      %p141 = scmp.eq.s32.totalorder %s24, 0
      %p142 = por %p140, %p141
      %s144 = sadd.s32 %s143, 1
      %p147 = scmp.eq.s32.totalorder %s18, 5
      %p148 = scmp.ne.s32.totalorder %s143, %s145
      %p149 = scmp.eq.s32.totalorder %s18, 0
      %p150 = por %p148, %p149
      %p151 = scmp.ne.s32.totalorder %s143, %s145
      %p152 = scmp.eq.s32.totalorder %s23, 5
      %p153 = por %p151, %p152
      %p154 = scmp.ne.s32.totalorder %s145, %s146
      %p155 = scmp.eq.s32.totalorder %s23, 0
      %p156 = por %p154, %p155
      %p157 = scmp.ne.s32.totalorder %s145, %s146
      %p158 = scmp.eq.s32.totalorder %s24, 5
      %p159 = por %p157, %p158
      %p161 = scmp.ne.s32.totalorder %s146, %s160
      %p162 = scmp.eq.s32.totalorder %s24, 0
      %p163 = por %p161, %p162
      %s165 = sadd.s32 %s164, 1
      %p168 = scmp.eq.s32.totalorder %s18, 5
      %p169 = scmp.ne.s32.totalorder %s164, %s166
      %p170 = scmp.eq.s32.totalorder %s18, 0
      %p171 = por %p169, %p170
      %p172 = scmp.ne.s32.totalorder %s164, %s166
      %p173 = scmp.eq.s32.totalorder %s23, 5
      %p174 = por %p172, %p173
      %p175 = scmp.ne.s32.totalorder %s166, %s167
      %p176 = scmp.eq.s32.totalorder %s23, 0
      %p177 = por %p175, %p176
      %p178 = scmp.ne.s32.totalorder %s166, %s167
      %p179 = scmp.eq.s32.totalorder %s24, 5
      %p180 = por %p178, %p179
      %p182 = scmp.ne.s32.totalorder %s167, %s181
      %p183 = scmp.eq.s32.totalorder %s24, 0
      %p184 = por %p182, %p183
      %s186 = sadd.s32 %s185, 1
      %p189 = scmp.eq.s32.totalorder %s18, 5
      %p190 = scmp.ne.s32.totalorder %s185, %s187
      %p191 = scmp.eq.s32.totalorder %s18, 0
      %p192 = por %p190, %p191
      %p193 = scmp.ne.s32.totalorder %s185, %s187
      %p194 = scmp.eq.s32.totalorder %s23, 5
      %p195 = por %p193, %p194
      %p196 = scmp.ne.s32.totalorder %s187, %s188
      %p197 = scmp.eq.s32.totalorder %s23, 0
      %p198 = por %p196, %p197
      %p199 = scmp.ne.s32.totalorder %s187, %s188
      %p200 = scmp.eq.s32.totalorder %s24, 5
      %p201 = por %p199, %p200
      %p203 = scmp.ne.s32.totalorder %s188, %s202
      %p204 = scmp.eq.s32.totalorder %s24, 0
      %p205 = por %p203, %p204
      %s206 = ssub.s32 %s25, %s37
      %s207 = ssub.s32 %s26, %s33
      %s208 = sor.u32 %s206, %s207
      %p209 = scmp.eq.s32.totalorder %s208, 0
      %s211 = sadd.s32 %s210, 1
      %s212 = scalar_select %p209, %s210, %s211
      %p215 = pneg %p209
      %p216 = scmp.eq.s32.totalorder %s18, 5
      %p217 = por %p215, %p216
      %p218 = scmp.ne.s32.totalorder %s210, %s213
      %p219 = scmp.eq.s32.totalorder %s18, 0
      %p220 = por %p218, %p219
      %p221 = scmp.ne.s32.totalorder %s210, %s213
      %p222 = scmp.eq.s32.totalorder %s23, 5
      %p223 = por %p221, %p222
      %p224 = scmp.ne.s32.totalorder %s213, %s214
      %p225 = scmp.eq.s32.totalorder %s23, 0
      %p226 = por %p224, %p225
      %p227 = scmp.ne.s32.totalorder %s213, %s214
      %p228 = scmp.eq.s32.totalorder %s24, 5
      %p229 = por %p227, %p228
      %p231 = scmp.ne.s32.totalorder %s214, %s230
      %p232 = scmp.eq.s32.totalorder %s24, 0
      %p233 = por %p231, %p232
      %p234 = scmp.le.s32.totalorder 1, %s18
      %p235 = scmp.lt.s32.totalorder %s18, 7
      %p236 = pnand %p234, %p235
      %p237 = pneg %p236
      // Predicated region
      $region9: #{tpu_custom_call.1} parent=5 // pred_check
        _
      $region10: #{tpu_custom_call.1} parent=5 // pred_check_branch
        %239 = sbr.rel (%p236) target = $region12
      $region11: #{tpu_custom_call.1} parent=5 // pred_region
        %s240 = ssub.s32 %s18, 1
        // Predicated region
        $region13: #{tpu_custom_call.1} parent=11 // pred_check
          %p241 = pneg %p51
        $region14: #{tpu_custom_call.1} parent=11 // pred_check_branch
          %243 = sbr.rel (%p241) target = $region16
        $region15: #{tpu_custom_call.1} parent=11 // pred_region
          _
        $region16: #{tpu_custom_call.1} parent=11 // pred_fallthru
          _
        // Predicated region
        $region17: #{tpu_custom_call.1} parent=11 // pred_check
          %p244 = pneg %p72
        $region18: #{tpu_custom_call.1} parent=11 // pred_check_branch
          %246 = sbr.rel (%p244) target = $region20
        $region19: #{tpu_custom_call.1} parent=11 // pred_region
          _
        $region20: #{tpu_custom_call.1} parent=11 // pred_fallthru
          _
        // Predicated region
        $region21: #{tpu_custom_call.1} parent=11 // pred_check
          %p247 = pneg %p93
        $region22: #{tpu_custom_call.1} parent=11 // pred_check_branch
          %249 = sbr.rel (%p247) target = $region24
        $region23: #{tpu_custom_call.1} parent=11 // pred_region
          _
        $region24: #{tpu_custom_call.1} parent=11 // pred_fallthru
          _
        // Predicated region
        $region25: #{tpu_custom_call.1} parent=11 // pred_check
          %p250 = pneg %p114
        $region26: #{tpu_custom_call.1} parent=11 // pred_check_branch
          %252 = sbr.rel (%p250) target = $region28
        $region27: #{tpu_custom_call.1} parent=11 // pred_region
          _
        $region28: #{tpu_custom_call.1} parent=11 // pred_fallthru
          _
        // Predicated region
        $region29: #{tpu_custom_call.1} parent=11 // pred_check
          %p253 = pneg %p135
        $region30: #{tpu_custom_call.1} parent=11 // pred_check_branch
          %255 = sbr.rel (%p253) target = $region32
        $region31: #{tpu_custom_call.1} parent=11 // pred_region
          _
        $region32: #{tpu_custom_call.1} parent=11 // pred_fallthru
          _
        // Predicated region
        $region33: #{tpu_custom_call.1} parent=11 // pred_check
          %p256 = pneg %p156
        $region34: #{tpu_custom_call.1} parent=11 // pred_check_branch
          %258 = sbr.rel (%p256) target = $region36
        $region35: #{tpu_custom_call.1} parent=11 // pred_region
          _
        $region36: #{tpu_custom_call.1} parent=11 // pred_fallthru
          _
        // Predicated region
        $region37: #{tpu_custom_call.1} parent=11 // pred_check
          %p259 = pneg %p177
        $region38: #{tpu_custom_call.1} parent=11 // pred_check_branch
          %261 = sbr.rel (%p259) target = $region40
        $region39: #{tpu_custom_call.1} parent=11 // pred_region
          _
        $region40: #{tpu_custom_call.1} parent=11 // pred_fallthru
          _
        // Predicated region
        $region41: #{tpu_custom_call.1} parent=11 // pred_check
          %p262 = pneg %p198
        $region42: #{tpu_custom_call.1} parent=11 // pred_check_branch
          %264 = sbr.rel (%p262) target = $region44
        $region43: #{tpu_custom_call.1} parent=11 // pred_region
          _
        $region44: #{tpu_custom_call.1} parent=11 // pred_fallthru
          _
      $region12: #{tpu_custom_call.1} parent=5 // pred_fallthru
        _
      %p265 = scmp.lt.s32.totalorder %s18, 6
      // Predicated region
      $region45: #{tpu_custom_call.1} parent=5 // pred_check
        %p266 = pneg %p265
      $region46: #{tpu_custom_call.1} parent=5 // pred_check_branch
        %268 = sbr.rel (%p266) target = $region48
      $region47: #{tpu_custom_call.1} parent=5 // pred_region
        _
      $region48: #{tpu_custom_call.1} parent=5 // pred_fallthru
        _
      %p269 = scmp.le.s32.totalorder 1, %s18
      %p270 = scmp.lt.s32.totalorder %s18, 7
      %p271 = pnand %p269, %p270
      %p272 = pneg %p271
      // Predicated region
      $region49: #{tpu_custom_call.1} parent=5 // pred_check
        _
      $region50: #{tpu_custom_call.1} parent=5 // pred_check_branch
        %274 = sbr.rel (%p271) target = $region52
      $region51: #{tpu_custom_call.1} parent=5 // pred_region
        %s275 = ssub.s32 %s18, 1
        %p276 = pneg %p51
        %p277 = pneg %p48
        %p278 = pneg %p72
        %p279 = pneg %p69
        %p280 = pneg %p93
        %p281 = pneg %p90
        %p282 = pneg %p114
        %p283 = pneg %p111
        %p284 = pneg %p135
        %p285 = pneg %p132
        %p286 = pneg %p156
        %p287 = pneg %p153
        %p288 = pneg %p177
        %p289 = pneg %p174
        %p290 = pneg %p198
        %p291 = pneg %p195
        %p292 = pneg %p226
        %p293 = pneg %p223
        %s294 = sand.u32 %s213, 1
        %s295 = scalar_lea.sflag [#allocation5], %s294
        %s296 = sand.u32 %s213, 1
        %s297 = smul.addr %s296, 16
        %s298 = scalar_lea.vmem [#allocation4], %s297
        %p299 = scmp.lt.s32.totalorder %s28, 0
        %s300 = ssub.s32 0, %s28
        %s301 = scalar_select %p299, %s300, %s28
        %s302 = sand.u32 %s301, 1
        %s303 = ssub.s32 0, %s302
        %s304 = scalar_select %p299, %s303, %s302
        %p305 = scmp.ne.s32.totalorder %s304, 0
        %p306 = scmp.lt.s32.totalorder %s304, 0
        %p307 = pnand %p306, %p305
        %p308 = pneg %p307
        %s309 = sadd.s32 %s304, 2
        %s310 = scalar_select %p308, %s309, %s304
        %p311 = scmp.eq.s32.totalorder %s28, 0
        // Predicated region
        $region53: #{tpu_custom_call.1} parent=51 // pred_check
          %p312 = pneg %p311
        $region54: #{tpu_custom_call.1} parent=51 // pred_check_branch
          %314 = sbr.rel (%p312) target = $region56
        $region55: #{tpu_custom_call.1} parent=51 // pred_region
          %s315 = smul.u32 %s27, 6
          %s316 = smul.addr %s315, 8
          %s317 = scalar_lea.vmem %s0, %s316
          %s318 = smul.u32 %s310, 6
          %s319 = sadd.s32 1, %s318
          %s320 = smul.addr %s319, 8
          %s321 = scalar_lea.vmem [#allocation2], %s320
          %s322 = scalar_lea.sflag [#allocation3], %s310
          %p324 = scmp.lt.u32.totalorder 16, 8
          %p325 = pneg %p324
          // Predicated region
          $region57: #{tpu_custom_call.1} parent=55 // pred_check
            _
          $region58: #{tpu_custom_call.1} parent=55 // pred_check_branch
            %327 = sbr.rel (%p324) target = $region60
          $region59: #{tpu_custom_call.1} parent=55 // pred_region
            %s344 = sand.u32 16, 7
            %p345 = scmp.eq.s32.totalorder %s344, 0
            // Predicated region
            $region72: #{tpu_custom_call.1} parent=59 // pred_check
              %p346 = pneg %p345
            $region73: #{tpu_custom_call.1} parent=59 // pred_check_branch
              %348 = sbr.rel (%p346) target = $region75
            $region74: #{tpu_custom_call.1} parent=59 // pred_region
              loop: start=0, step=1, limit=1
              $region76: #{tpu_custom_call.1} parent=74 // loop_pre_header
                _
              $region77: #{tpu_custom_call.1} parent=74 // loop_header
                %s350 = sphi 0, %s354
                %p351 = scmp.ge.s32.totalorder %s350, 1
                %s355 = sphi %s317, %s317
                %s356 = sphi %s321, %s321
              $region78: #{tpu_custom_call.1} parent=74 // loop_header_branch
                %353 = sbr.rel (%p351) target = $region82
              $region79: #{tpu_custom_call.1} parent=74 // loop_body
                %v357 = vld [vmem:[%s355] sm:$0xff]
                %358 = vst [vmem:[%s356] sm:$0xff] %v357
                %v359 = vld [vmem:[%s355 + $0x8] sm:$0xff]
                %360 = vst [vmem:[%s356 + $0x8] sm:$0xff] %v359
                %v361 = vld [vmem:[%s355 + $0x18] sm:$0xff]
                %362 = vst [vmem:[%s356 + $0x18] sm:$0xff] %v361
                %v363 = vld [vmem:[%s355 + $0x20] sm:$0xff]
                %364 = vst [vmem:[%s356 + $0x20] sm:$0xff] %v363
              $region80: #{tpu_custom_call.1} parent=74 // loop_footer
                %s354 = sadd.s32 1, %s350
              $region81: #{tpu_custom_call.1} parent=74 // loop_footer_branch
                %349 = sbr.rel target = $region77
              $region82: #{tpu_custom_call.1} parent=74 // loop_exit
                _
            $region75: #{tpu_custom_call.1} parent=59 // pred_fallthru
              _
            %p365 = pneg %p345
            // Predicated region
            $region83: #{tpu_custom_call.1} parent=59 // pred_check
              _
            $region84: #{tpu_custom_call.1} parent=59 // pred_check_branch
              %367 = sbr.rel (%p345) target = $region86
            $region85: #{tpu_custom_call.1} parent=59 // pred_region
              %s368 = sand.u32 16, 7
            $region86: #{tpu_custom_call.1} parent=59 // pred_fallthru
              _
          $region60: #{tpu_custom_call.1} parent=55 // pred_fallthru
            _
          // Predicated region
          $region61: #{tpu_custom_call.1} parent=55 // pred_check
            %p328 = pneg %p324
          $region62: #{tpu_custom_call.1} parent=55 // pred_check_branch
            %330 = sbr.rel (%p328) target = $region64
          $region63: #{tpu_custom_call.1} parent=55 // pred_region
            %s331 = sshllo.u32 0, 16
            loop: start=0, step=1, limit=1
            $region65: #{tpu_custom_call.1} parent=63 // loop_pre_header
              _
            $region66: #{tpu_custom_call.1} parent=63 // loop_header
              %s333 = sphi 0, %s337
              %p334 = scmp.ge.s32.totalorder %s333, 1
              %s338 = sphi %s317, %s317
              %s339 = sphi %s321, %s321
            $region67: #{tpu_custom_call.1} parent=63 // loop_header_branch
              %336 = sbr.rel (%p334) target = $region71
            $region68: #{tpu_custom_call.1} parent=63 // loop_body
              %v340 = vld [vmem:[%s338] sm:%s331]
              %341 = vst [vmem:[%s339] sm:%s331] %v340
              %v342 = vld [vmem:[%s338 + $0x18] sm:%s331]
              %343 = vst [vmem:[%s339 + $0x18] sm:%s331] %v342
            $region69: #{tpu_custom_call.1} parent=63 // loop_footer
              %s337 = sadd.s32 1, %s333
            $region70: #{tpu_custom_call.1} parent=63 // loop_footer_branch
              %332 = sbr.rel target = $region66
            $region71: #{tpu_custom_call.1} parent=63 // loop_exit
              _
          $region64: #{tpu_custom_call.1} parent=55 // pred_fallthru
            _
          // Predicated region
          $region87: #{tpu_custom_call.1} parent=55 // pred_check
            _
          $region88: #{tpu_custom_call.1} parent=55 // pred_check_branch
            %371 = sbr.rel (0) target = $region90
          $region89: #{tpu_custom_call.1} parent=55 // pred_region
            %372 = vsyncadd %s322, 512
          $region90: #{tpu_custom_call.1} parent=55 // pred_fallthru
            _
          %p373 = scmp.eq.s32.totalorder %s28, 2
          // Predicated region
          $region91: #{tpu_custom_call.1} parent=55 // pred_check
            %p374 = pneg %p373
          $region92: #{tpu_custom_call.1} parent=55 // pred_check_branch
            %376 = sbr.rel (%p374) target = $region94
          $region93: #{tpu_custom_call.1} parent=55 // pred_region
            %s377 = smul.u32 %s28, 128
            %s378 = ssub.s32 %s377, 128
            %s379 = sshra.s32 %s378, 7
            %s380 = sand.u32 %s378, 127
            %s381 = sadd.s32 %s379, %s315
            %s382 = smul.addr %s381, 8
            %s383 = scalar_lea.vmem %s0, %s382
            %s384 = smul.addr %s318, 8
            %s385 = scalar_lea.vmem [#allocation2], %s384
            %p387 = scmp.lt.u32.totalorder 16, 8
            %p388 = pneg %p387
            // Predicated region
            $region95: #{tpu_custom_call.1} parent=93 // pred_check
              _
            $region96: #{tpu_custom_call.1} parent=93 // pred_check_branch
              %390 = sbr.rel (%p387) target = $region98
            $region97: #{tpu_custom_call.1} parent=93 // pred_region
              %s407 = sand.u32 16, 7
              %p408 = scmp.eq.s32.totalorder %s407, 0
              // Predicated region
              $region110: #{tpu_custom_call.1} parent=97 // pred_check
                %p409 = pneg %p408
              $region111: #{tpu_custom_call.1} parent=97 // pred_check_branch
                %411 = sbr.rel (%p409) target = $region113
              $region112: #{tpu_custom_call.1} parent=97 // pred_region
                loop: start=0, step=1, limit=1
                $region114: #{tpu_custom_call.1} parent=112 // loop_pre_header
                  _
                $region115: #{tpu_custom_call.1} parent=112 // loop_header
                  %s413 = sphi 0, %s417
                  %p414 = scmp.ge.s32.totalorder %s413, 1
                  %s418 = sphi %s383, %s383
                  %s419 = sphi %s385, %s385
                $region116: #{tpu_custom_call.1} parent=112 // loop_header_branch
                  %416 = sbr.rel (%p414) target = $region120
                $region117: #{tpu_custom_call.1} parent=112 // loop_body
                  %v420 = vld [vmem:[%s418] sm:$0xff]
                  %421 = vst [vmem:[%s419] sm:$0xff] %v420
                  %v422 = vld [vmem:[%s418 + $0x8] sm:$0xff]
                  %423 = vst [vmem:[%s419 + $0x8] sm:$0xff] %v422
                  %v424 = vld [vmem:[%s418 + $0x18] sm:$0xff]
                  %425 = vst [vmem:[%s419 + $0x18] sm:$0xff] %v424
                  %v426 = vld [vmem:[%s418 + $0x20] sm:$0xff]
                  %427 = vst [vmem:[%s419 + $0x20] sm:$0xff] %v426
                $region118: #{tpu_custom_call.1} parent=112 // loop_footer
                  %s417 = sadd.s32 1, %s413
                $region119: #{tpu_custom_call.1} parent=112 // loop_footer_branch
                  %412 = sbr.rel target = $region115
                $region120: #{tpu_custom_call.1} parent=112 // loop_exit
                  _
              $region113: #{tpu_custom_call.1} parent=97 // pred_fallthru
                _
              %p428 = pneg %p408
              // Predicated region
              $region121: #{tpu_custom_call.1} parent=97 // pred_check
                _
              $region122: #{tpu_custom_call.1} parent=97 // pred_check_branch
                %430 = sbr.rel (%p408) target = $region124
              $region123: #{tpu_custom_call.1} parent=97 // pred_region
                %s431 = sand.u32 16, 7
              $region124: #{tpu_custom_call.1} parent=97 // pred_fallthru
                _
            $region98: #{tpu_custom_call.1} parent=93 // pred_fallthru
              _
            // Predicated region
            $region99: #{tpu_custom_call.1} parent=93 // pred_check
              %p391 = pneg %p387
            $region100: #{tpu_custom_call.1} parent=93 // pred_check_branch
              %393 = sbr.rel (%p391) target = $region102
            $region101: #{tpu_custom_call.1} parent=93 // pred_region
              %s394 = sshllo.u32 0, 16
              loop: start=0, step=1, limit=1
              $region103: #{tpu_custom_call.1} parent=101 // loop_pre_header
                _
              $region104: #{tpu_custom_call.1} parent=101 // loop_header
                %s396 = sphi 0, %s400
                %p397 = scmp.ge.s32.totalorder %s396, 1
                %s401 = sphi %s383, %s383
                %s402 = sphi %s385, %s385
              $region105: #{tpu_custom_call.1} parent=101 // loop_header_branch
                %399 = sbr.rel (%p397) target = $region109
              $region106: #{tpu_custom_call.1} parent=101 // loop_body
                %v403 = vld [vmem:[%s401] sm:%s394]
                %404 = vst [vmem:[%s402] sm:%s394] %v403
                %v405 = vld [vmem:[%s401 + $0x18] sm:%s394]
                %406 = vst [vmem:[%s402 + $0x18] sm:%s394] %v405
              $region107: #{tpu_custom_call.1} parent=101 // loop_footer
                %s400 = sadd.s32 1, %s396
              $region108: #{tpu_custom_call.1} parent=101 // loop_footer_branch
                %395 = sbr.rel target = $region104
              $region109: #{tpu_custom_call.1} parent=101 // loop_exit
                _
            $region102: #{tpu_custom_call.1} parent=93 // pred_fallthru
              _
            // Predicated region
            $region125: #{tpu_custom_call.1} parent=93 // pred_check
              _
            $region126: #{tpu_custom_call.1} parent=93 // pred_check_branch
              %434 = sbr.rel (0) target = $region128
            $region127: #{tpu_custom_call.1} parent=93 // pred_region
              %435 = vsyncadd %s322, 512
            $region128: #{tpu_custom_call.1} parent=93 // pred_fallthru
              _
          $region94: #{tpu_custom_call.1} parent=55 // pred_fallthru
            _
          %p436 = scmp.gt.s32.totalorder %s28, 0
          %p437 = scmp.lt.s32.totalorder %s28, 2
          %p438 = pnand %p436, %p437
          %p439 = pneg %p438
          // Predicated region
          $region129: #{tpu_custom_call.1} parent=55 // pred_check
            _
          $region130: #{tpu_custom_call.1} parent=55 // pred_check_branch
            %441 = sbr.rel (%p438) target = $region132
          $region131: #{tpu_custom_call.1} parent=55 // pred_region
            %s442 = smul.u32 %s28, 128
            %s443 = ssub.s32 %s442, 128
            %s444 = sshra.s32 %s443, 7
            %s445 = sand.u32 %s443, 127
            %s446 = sadd.s32 %s444, %s315
            %s447 = smul.addr %s446, 8
            %s448 = scalar_lea.vmem %s0, %s447
            %s449 = smul.addr %s318, 8
            %s450 = scalar_lea.vmem [#allocation2], %s449
            %p452 = scmp.lt.u32.totalorder 48, 8
            %p453 = pneg %p452
            // Predicated region
            $region133: #{tpu_custom_call.1} parent=131 // pred_check
              _
            $region134: #{tpu_custom_call.1} parent=131 // pred_check_branch
              %455 = sbr.rel (%p452) target = $region136
            $region135: #{tpu_custom_call.1} parent=131 // pred_region
              %s470 = sand.u32 48, 7
              %p471 = scmp.eq.s32.totalorder %s470, 0
              // Predicated region
              $region148: #{tpu_custom_call.1} parent=135 // pred_check
                %p472 = pneg %p471
              $region149: #{tpu_custom_call.1} parent=135 // pred_check_branch
                %474 = sbr.rel (%p472) target = $region151
              $region150: #{tpu_custom_call.1} parent=135 // pred_region
                loop: start=0, step=1, limit=1
                $region152: #{tpu_custom_call.1} parent=150 // loop_pre_header
                  _
                $region153: #{tpu_custom_call.1} parent=150 // loop_header
                  %s476 = sphi 0, %s480
                  %p477 = scmp.ge.s32.totalorder %s476, 1
                  %s481 = sphi %s448, %s448
                  %s482 = sphi %s450, %s450
                $region154: #{tpu_custom_call.1} parent=150 // loop_header_branch
                  %479 = sbr.rel (%p477) target = $region158
                $region155: #{tpu_custom_call.1} parent=150 // loop_body
                  %v483 = vld [vmem:[%s481] sm:$0xff]
                  %484 = vst [vmem:[%s482] sm:$0xff] %v483
                  %v485 = vld [vmem:[%s481 + $0x8] sm:$0xff]
                  %486 = vst [vmem:[%s482 + $0x8] sm:$0xff] %v485
                  %v487 = vld [vmem:[%s481 + $0x10] sm:$0xff]
                  %488 = vst [vmem:[%s482 + $0x10] sm:$0xff] %v487
                  %v489 = vld [vmem:[%s481 + $0x18] sm:$0xff]
                  %490 = vst [vmem:[%s482 + $0x18] sm:$0xff] %v489
                  %v491 = vld [vmem:[%s481 + $0x20] sm:$0xff]
                  %492 = vst [vmem:[%s482 + $0x20] sm:$0xff] %v491
                  %v493 = vld [vmem:[%s481 + $0x28] sm:$0xff]
                  %494 = vst [vmem:[%s482 + $0x28] sm:$0xff] %v493
                $region156: #{tpu_custom_call.1} parent=150 // loop_footer
                  %s480 = sadd.s32 1, %s476
                $region157: #{tpu_custom_call.1} parent=150 // loop_footer_branch
                  %475 = sbr.rel target = $region153
                $region158: #{tpu_custom_call.1} parent=150 // loop_exit
                  _
              $region151: #{tpu_custom_call.1} parent=135 // pred_fallthru
                _
              %p495 = pneg %p471
              // Predicated region
              $region159: #{tpu_custom_call.1} parent=135 // pred_check
                _
              $region160: #{tpu_custom_call.1} parent=135 // pred_check_branch
                %497 = sbr.rel (%p471) target = $region162
              $region161: #{tpu_custom_call.1} parent=135 // pred_region
                %s498 = sand.u32 48, 7
              $region162: #{tpu_custom_call.1} parent=135 // pred_fallthru
                _
            $region136: #{tpu_custom_call.1} parent=131 // pred_fallthru
              _
            // Predicated region
            $region137: #{tpu_custom_call.1} parent=131 // pred_check
              %p456 = pneg %p452
            $region138: #{tpu_custom_call.1} parent=131 // pred_check_branch
              %458 = sbr.rel (%p456) target = $region140
            $region139: #{tpu_custom_call.1} parent=131 // pred_region
              %s459 = sshllo.u32 0, 48
              loop: start=0, step=1, limit=1
              $region141: #{tpu_custom_call.1} parent=139 // loop_pre_header
                _
              $region142: #{tpu_custom_call.1} parent=139 // loop_header
                %s461 = sphi 0, %s465
                %p462 = scmp.ge.s32.totalorder %s461, 1
                %s466 = sphi %s448, %s448
                %s467 = sphi %s450, %s450
              $region143: #{tpu_custom_call.1} parent=139 // loop_header_branch
                %464 = sbr.rel (%p462) target = $region147
              $region144: #{tpu_custom_call.1} parent=139 // loop_body
                %v468 = vld [vmem:[%s466] sm:%s459]
                %469 = vst [vmem:[%s467] sm:%s459] %v468
              $region145: #{tpu_custom_call.1} parent=139 // loop_footer
                %s465 = sadd.s32 1, %s461
              $region146: #{tpu_custom_call.1} parent=139 // loop_footer_branch
                %460 = sbr.rel target = $region142
              $region147: #{tpu_custom_call.1} parent=139 // loop_exit
                _
            $region140: #{tpu_custom_call.1} parent=131 // pred_fallthru
              _
            // Predicated region
            $region163: #{tpu_custom_call.1} parent=131 // pred_check
              _
            $region164: #{tpu_custom_call.1} parent=131 // pred_check_branch
              %501 = sbr.rel (0) target = $region166
            $region165: #{tpu_custom_call.1} parent=131 // pred_region
              %502 = vsyncadd %s322, 768
            $region166: #{tpu_custom_call.1} parent=131 // pred_fallthru
              _
          $region132: #{tpu_custom_call.1} parent=55 // pred_fallthru
            _
        $region56: #{tpu_custom_call.1} parent=51 // pred_fallthru
          _
        %s503 = sadd.s32 %s28, 1
        %p504 = scmp.lt.s32.totalorder %s503, 3
        // Predicated region
        $region167: #{tpu_custom_call.1} parent=51 // pred_check
          %p505 = pneg %p504
        $region168: #{tpu_custom_call.1} parent=51 // pred_check_branch
          %507 = sbr.rel (%p505) target = $region170
        $region169: #{tpu_custom_call.1} parent=51 // pred_region
          %s508 = ssub.s32 1, %s310
          %p509 = scmp.eq.s32.totalorder %s503, 0
          // Predicated region
          $region171: #{tpu_custom_call.1} parent=169 // pred_check
            %p510 = pneg %p509
          $region172: #{tpu_custom_call.1} parent=169 // pred_check_branch
            %512 = sbr.rel (%p510) target = $region174
          $region173: #{tpu_custom_call.1} parent=169 // pred_region
            %s513 = smul.u32 %s27, 6
            %s514 = smul.addr %s513, 8
            %s515 = scalar_lea.vmem %s0, %s514
            %s516 = smul.u32 %s508, 6
            %s517 = sadd.s32 1, %s516
            %s518 = smul.addr %s517, 8
            %s519 = scalar_lea.vmem [#allocation2], %s518
            %s520 = scalar_lea.sflag [#allocation3], %s508
            %p522 = scmp.lt.u32.totalorder 16, 8
            %p523 = pneg %p522
            // Predicated region
            $region175: #{tpu_custom_call.1} parent=173 // pred_check
              _
            $region176: #{tpu_custom_call.1} parent=173 // pred_check_branch
              %525 = sbr.rel (%p522) target = $region178
            $region177: #{tpu_custom_call.1} parent=173 // pred_region
              %s542 = sand.u32 16, 7
              %p543 = scmp.eq.s32.totalorder %s542, 0
              // Predicated region
              $region190: #{tpu_custom_call.1} parent=177 // pred_check
                %p544 = pneg %p543
              $region191: #{tpu_custom_call.1} parent=177 // pred_check_branch
                %546 = sbr.rel (%p544) target = $region193
              $region192: #{tpu_custom_call.1} parent=177 // pred_region
                loop: start=0, step=1, limit=1
                $region194: #{tpu_custom_call.1} parent=192 // loop_pre_header
                  _
                $region195: #{tpu_custom_call.1} parent=192 // loop_header
                  %s548 = sphi 0, %s552
                  %p549 = scmp.ge.s32.totalorder %s548, 1
                  %s553 = sphi %s515, %s515
                  %s554 = sphi %s519, %s519
                $region196: #{tpu_custom_call.1} parent=192 // loop_header_branch
                  %551 = sbr.rel (%p549) target = $region200
                $region197: #{tpu_custom_call.1} parent=192 // loop_body
                  %v555 = vld [vmem:[%s553] sm:$0xff]
                  %556 = vst [vmem:[%s554] sm:$0xff] %v555
                  %v557 = vld [vmem:[%s553 + $0x8] sm:$0xff]
                  %558 = vst [vmem:[%s554 + $0x8] sm:$0xff] %v557
                  %v559 = vld [vmem:[%s553 + $0x18] sm:$0xff]
                  %560 = vst [vmem:[%s554 + $0x18] sm:$0xff] %v559
                  %v561 = vld [vmem:[%s553 + $0x20] sm:$0xff]
                  %562 = vst [vmem:[%s554 + $0x20] sm:$0xff] %v561
                $region198: #{tpu_custom_call.1} parent=192 // loop_footer
                  %s552 = sadd.s32 1, %s548
                $region199: #{tpu_custom_call.1} parent=192 // loop_footer_branch
                  %547 = sbr.rel target = $region195
                $region200: #{tpu_custom_call.1} parent=192 // loop_exit
                  _
              $region193: #{tpu_custom_call.1} parent=177 // pred_fallthru
                _
              %p563 = pneg %p543
              // Predicated region
              $region201: #{tpu_custom_call.1} parent=177 // pred_check
                _
              $region202: #{tpu_custom_call.1} parent=177 // pred_check_branch
                %565 = sbr.rel (%p543) target = $region204
              $region203: #{tpu_custom_call.1} parent=177 // pred_region
                %s566 = sand.u32 16, 7
              $region204: #{tpu_custom_call.1} parent=177 // pred_fallthru
                _
            $region178: #{tpu_custom_call.1} parent=173 // pred_fallthru
              _
            // Predicated region
            $region179: #{tpu_custom_call.1} parent=173 // pred_check
              %p526 = pneg %p522
            $region180: #{tpu_custom_call.1} parent=173 // pred_check_branch
              %528 = sbr.rel (%p526) target = $region182
            $region181: #{tpu_custom_call.1} parent=173 // pred_region
              %s529 = sshllo.u32 0, 16
              loop: start=0, step=1, limit=1
              $region183: #{tpu_custom_call.1} parent=181 // loop_pre_header
                _
              $region184: #{tpu_custom_call.1} parent=181 // loop_header
                %s531 = sphi 0, %s535
                %p532 = scmp.ge.s32.totalorder %s531, 1
                %s536 = sphi %s515, %s515
                %s537 = sphi %s519, %s519
              $region185: #{tpu_custom_call.1} parent=181 // loop_header_branch
                %534 = sbr.rel (%p532) target = $region189
              $region186: #{tpu_custom_call.1} parent=181 // loop_body
                %v538 = vld [vmem:[%s536] sm:%s529]
                %539 = vst [vmem:[%s537] sm:%s529] %v538
                %v540 = vld [vmem:[%s536 + $0x18] sm:%s529]
                %541 = vst [vmem:[%s537 + $0x18] sm:%s529] %v540
              $region187: #{tpu_custom_call.1} parent=181 // loop_footer
                %s535 = sadd.s32 1, %s531
              $region188: #{tpu_custom_call.1} parent=181 // loop_footer_branch
                %530 = sbr.rel target = $region184
              $region189: #{tpu_custom_call.1} parent=181 // loop_exit
                _
            $region182: #{tpu_custom_call.1} parent=173 // pred_fallthru
              _
            // Predicated region
            $region205: #{tpu_custom_call.1} parent=173 // pred_check
              _
            $region206: #{tpu_custom_call.1} parent=173 // pred_check_branch
              %569 = sbr.rel (0) target = $region208
            $region207: #{tpu_custom_call.1} parent=173 // pred_region
              %570 = vsyncadd %s520, 512
            $region208: #{tpu_custom_call.1} parent=173 // pred_fallthru
              _
          $region174: #{tpu_custom_call.1} parent=169 // pred_fallthru
            _
          %p571 = scmp.eq.s32.totalorder %s503, 2
          // Predicated region
          $region209: #{tpu_custom_call.1} parent=169 // pred_check
            %p572 = pneg %p571
          $region210: #{tpu_custom_call.1} parent=169 // pred_check_branch
            %574 = sbr.rel (%p572) target = $region212
          $region211: #{tpu_custom_call.1} parent=169 // pred_region
            %s575 = smul.u32 %s503, 128
            %s576 = ssub.s32 %s575, 128
            %s577 = sshra.s32 %s576, 7
            %s578 = sand.u32 %s576, 127
            %s579 = smul.u32 %s27, 6
            %s580 = sadd.s32 %s577, %s579
            %s581 = smul.addr %s580, 8
            %s582 = scalar_lea.vmem %s0, %s581
            %s583 = smul.u32 %s508, 6
            %s584 = smul.addr %s583, 8
            %s585 = scalar_lea.vmem [#allocation2], %s584
            %s586 = scalar_lea.sflag [#allocation3], %s508
            %p588 = scmp.lt.u32.totalorder 16, 8
            %p589 = pneg %p588
            // Predicated region
            $region213: #{tpu_custom_call.1} parent=211 // pred_check
              _
            $region214: #{tpu_custom_call.1} parent=211 // pred_check_branch
              %591 = sbr.rel (%p588) target = $region216
            $region215: #{tpu_custom_call.1} parent=211 // pred_region
              %s608 = sand.u32 16, 7
              %p609 = scmp.eq.s32.totalorder %s608, 0
              // Predicated region
              $region228: #{tpu_custom_call.1} parent=215 // pred_check
                %p610 = pneg %p609
              $region229: #{tpu_custom_call.1} parent=215 // pred_check_branch
                %612 = sbr.rel (%p610) target = $region231
              $region230: #{tpu_custom_call.1} parent=215 // pred_region
                loop: start=0, step=1, limit=1
                $region232: #{tpu_custom_call.1} parent=230 // loop_pre_header
                  _
                $region233: #{tpu_custom_call.1} parent=230 // loop_header
                  %s614 = sphi 0, %s618
                  %p615 = scmp.ge.s32.totalorder %s614, 1
                  %s619 = sphi %s582, %s582
                  %s620 = sphi %s585, %s585
                $region234: #{tpu_custom_call.1} parent=230 // loop_header_branch
                  %617 = sbr.rel (%p615) target = $region238
                $region235: #{tpu_custom_call.1} parent=230 // loop_body
                  %v621 = vld [vmem:[%s619] sm:$0xff]
                  %622 = vst [vmem:[%s620] sm:$0xff] %v621
                  %v623 = vld [vmem:[%s619 + $0x8] sm:$0xff]
                  %624 = vst [vmem:[%s620 + $0x8] sm:$0xff] %v623
                  %v625 = vld [vmem:[%s619 + $0x18] sm:$0xff]
                  %626 = vst [vmem:[%s620 + $0x18] sm:$0xff] %v625
                  %v627 = vld [vmem:[%s619 + $0x20] sm:$0xff]
                  %628 = vst [vmem:[%s620 + $0x20] sm:$0xff] %v627
                $region236: #{tpu_custom_call.1} parent=230 // loop_footer
                  %s618 = sadd.s32 1, %s614
                $region237: #{tpu_custom_call.1} parent=230 // loop_footer_branch
                  %613 = sbr.rel target = $region233
                $region238: #{tpu_custom_call.1} parent=230 // loop_exit
                  _
              $region231: #{tpu_custom_call.1} parent=215 // pred_fallthru
                _
              %p629 = pneg %p609
              // Predicated region
              $region239: #{tpu_custom_call.1} parent=215 // pred_check
                _
              $region240: #{tpu_custom_call.1} parent=215 // pred_check_branch
                %631 = sbr.rel (%p609) target = $region242
              $region241: #{tpu_custom_call.1} parent=215 // pred_region
                %s632 = sand.u32 16, 7
              $region242: #{tpu_custom_call.1} parent=215 // pred_fallthru
                _
            $region216: #{tpu_custom_call.1} parent=211 // pred_fallthru
              _
            // Predicated region
            $region217: #{tpu_custom_call.1} parent=211 // pred_check
              %p592 = pneg %p588
            $region218: #{tpu_custom_call.1} parent=211 // pred_check_branch
              %594 = sbr.rel (%p592) target = $region220
            $region219: #{tpu_custom_call.1} parent=211 // pred_region
              %s595 = sshllo.u32 0, 16
              loop: start=0, step=1, limit=1
              $region221: #{tpu_custom_call.1} parent=219 // loop_pre_header
                _
              $region222: #{tpu_custom_call.1} parent=219 // loop_header
                %s597 = sphi 0, %s601
                %p598 = scmp.ge.s32.totalorder %s597, 1
                %s602 = sphi %s582, %s582
                %s603 = sphi %s585, %s585
              $region223: #{tpu_custom_call.1} parent=219 // loop_header_branch
                %600 = sbr.rel (%p598) target = $region227
              $region224: #{tpu_custom_call.1} parent=219 // loop_body
                %v604 = vld [vmem:[%s602] sm:%s595]
                %605 = vst [vmem:[%s603] sm:%s595] %v604
                %v606 = vld [vmem:[%s602 + $0x18] sm:%s595]
                %607 = vst [vmem:[%s603 + $0x18] sm:%s595] %v606
              $region225: #{tpu_custom_call.1} parent=219 // loop_footer
                %s601 = sadd.s32 1, %s597
              $region226: #{tpu_custom_call.1} parent=219 // loop_footer_branch
                %596 = sbr.rel target = $region222
              $region227: #{tpu_custom_call.1} parent=219 // loop_exit
                _
            $region220: #{tpu_custom_call.1} parent=211 // pred_fallthru
              _
            // Predicated region
            $region243: #{tpu_custom_call.1} parent=211 // pred_check
              _
            $region244: #{tpu_custom_call.1} parent=211 // pred_check_branch
              %635 = sbr.rel (0) target = $region246
            $region245: #{tpu_custom_call.1} parent=211 // pred_region
              %636 = vsyncadd %s586, 512
            $region246: #{tpu_custom_call.1} parent=211 // pred_fallthru
              _
          $region212: #{tpu_custom_call.1} parent=169 // pred_fallthru
            _
          %p637 = scmp.gt.s32.totalorder %s503, 0
          %p638 = scmp.lt.s32.totalorder %s503, 2
          %p639 = pnand %p637, %p638
          %p640 = pneg %p639
          // Predicated region
          $region247: #{tpu_custom_call.1} parent=169 // pred_check
            _
          $region248: #{tpu_custom_call.1} parent=169 // pred_check_branch
            %642 = sbr.rel (%p639) target = $region250
          $region249: #{tpu_custom_call.1} parent=169 // pred_region
            %s643 = smul.u32 %s503, 128
            %s644 = ssub.s32 %s643, 128
            %s645 = sshra.s32 %s644, 7
            %s646 = sand.u32 %s644, 127
            %s647 = smul.u32 %s27, 6
            %s648 = sadd.s32 %s645, %s647
            %s649 = smul.addr %s648, 8
            %s650 = scalar_lea.vmem %s0, %s649
            %s651 = smul.u32 %s508, 6
            %s652 = smul.addr %s651, 8
            %s653 = scalar_lea.vmem [#allocation2], %s652
            %s654 = scalar_lea.sflag [#allocation3], %s508
            %p656 = scmp.lt.u32.totalorder 48, 8
            %p657 = pneg %p656
            // Predicated region
            $region251: #{tpu_custom_call.1} parent=249 // pred_check
              _
            $region252: #{tpu_custom_call.1} parent=249 // pred_check_branch
              %659 = sbr.rel (%p656) target = $region254
            $region253: #{tpu_custom_call.1} parent=249 // pred_region
              %s674 = sand.u32 48, 7
              %p675 = scmp.eq.s32.totalorder %s674, 0
              // Predicated region
              $region266: #{tpu_custom_call.1} parent=253 // pred_check
                %p676 = pneg %p675
              $region267: #{tpu_custom_call.1} parent=253 // pred_check_branch
                %678 = sbr.rel (%p676) target = $region269
              $region268: #{tpu_custom_call.1} parent=253 // pred_region
                loop: start=0, step=1, limit=1
                $region270: #{tpu_custom_call.1} parent=268 // loop_pre_header
                  _
                $region271: #{tpu_custom_call.1} parent=268 // loop_header
                  %s680 = sphi 0, %s684
                  %p681 = scmp.ge.s32.totalorder %s680, 1
                  %s685 = sphi %s650, %s650
                  %s686 = sphi %s653, %s653
                $region272: #{tpu_custom_call.1} parent=268 // loop_header_branch
                  %683 = sbr.rel (%p681) target = $region276
                $region273: #{tpu_custom_call.1} parent=268 // loop_body
                  %v687 = vld [vmem:[%s685] sm:$0xff]
                  %688 = vst [vmem:[%s686] sm:$0xff] %v687
                  %v689 = vld [vmem:[%s685 + $0x8] sm:$0xff]
                  %690 = vst [vmem:[%s686 + $0x8] sm:$0xff] %v689
                  %v691 = vld [vmem:[%s685 + $0x10] sm:$0xff]
                  %692 = vst [vmem:[%s686 + $0x10] sm:$0xff] %v691
                  %v693 = vld [vmem:[%s685 + $0x18] sm:$0xff]
                  %694 = vst [vmem:[%s686 + $0x18] sm:$0xff] %v693
                  %v695 = vld [vmem:[%s685 + $0x20] sm:$0xff]
                  %696 = vst [vmem:[%s686 + $0x20] sm:$0xff] %v695
                  %v697 = vld [vmem:[%s685 + $0x28] sm:$0xff]
                  %698 = vst [vmem:[%s686 + $0x28] sm:$0xff] %v697
                $region274: #{tpu_custom_call.1} parent=268 // loop_footer
                  %s684 = sadd.s32 1, %s680
                $region275: #{tpu_custom_call.1} parent=268 // loop_footer_branch
                  %679 = sbr.rel target = $region271
                $region276: #{tpu_custom_call.1} parent=268 // loop_exit
                  _
              $region269: #{tpu_custom_call.1} parent=253 // pred_fallthru
                _
              %p699 = pneg %p675
              // Predicated region
              $region277: #{tpu_custom_call.1} parent=253 // pred_check
                _
              $region278: #{tpu_custom_call.1} parent=253 // pred_check_branch
                %701 = sbr.rel (%p675) target = $region280
              $region279: #{tpu_custom_call.1} parent=253 // pred_region
                %s702 = sand.u32 48, 7
              $region280: #{tpu_custom_call.1} parent=253 // pred_fallthru
                _
            $region254: #{tpu_custom_call.1} parent=249 // pred_fallthru
              _
            // Predicated region
            $region255: #{tpu_custom_call.1} parent=249 // pred_check
              %p660 = pneg %p656
            $region256: #{tpu_custom_call.1} parent=249 // pred_check_branch
              %662 = sbr.rel (%p660) target = $region258
            $region257: #{tpu_custom_call.1} parent=249 // pred_region
              %s663 = sshllo.u32 0, 48
              loop: start=0, step=1, limit=1
              $region259: #{tpu_custom_call.1} parent=257 // loop_pre_header
                _
              $region260: #{tpu_custom_call.1} parent=257 // loop_header
                %s665 = sphi 0, %s669
                %p666 = scmp.ge.s32.totalorder %s665, 1
                %s670 = sphi %s650, %s650
                %s671 = sphi %s653, %s653
              $region261: #{tpu_custom_call.1} parent=257 // loop_header_branch
                %668 = sbr.rel (%p666) target = $region265
              $region262: #{tpu_custom_call.1} parent=257 // loop_body
                %v672 = vld [vmem:[%s670] sm:%s663]
                %673 = vst [vmem:[%s671] sm:%s663] %v672
              $region263: #{tpu_custom_call.1} parent=257 // loop_footer
                %s669 = sadd.s32 1, %s665
              $region264: #{tpu_custom_call.1} parent=257 // loop_footer_branch
                %664 = sbr.rel target = $region260
              $region265: #{tpu_custom_call.1} parent=257 // loop_exit
                _
            $region258: #{tpu_custom_call.1} parent=249 // pred_fallthru
              _
            // Predicated region
            $region281: #{tpu_custom_call.1} parent=249 // pred_check
              _
            $region282: #{tpu_custom_call.1} parent=249 // pred_check_branch
              %705 = sbr.rel (0) target = $region284
            $region283: #{tpu_custom_call.1} parent=249 // pred_region
              %706 = vsyncadd %s654, 768
            $region284: #{tpu_custom_call.1} parent=249 // pred_fallthru
              _
          $region250: #{tpu_custom_call.1} parent=169 // pred_fallthru
            _
        $region170: #{tpu_custom_call.1} parent=51 // pred_fallthru
          _
        // Predicated region
        $region285: #{tpu_custom_call.1} parent=51 // pred_check
          %p707 = pneg %p311
        $region286: #{tpu_custom_call.1} parent=51 // pred_check_branch
          %709 = sbr.rel (%p707) target = $region288
        $region287: #{tpu_custom_call.1} parent=51 // pred_region
          %s710 = scalar_lea.sflag [#allocation3], %s310
          %s711 = smul.u32 8, 2
          %s712 = smul.u32 %s711, 2
          %s713 = sshll.u32 %s712, 4
          %714 = dma.done %s710, %s713
        $region288: #{tpu_custom_call.1} parent=51 // pred_fallthru
          _
        %p715 = scmp.eq.s32.totalorder %s28, 2
        // Predicated region
        $region289: #{tpu_custom_call.1} parent=51 // pred_check
          %p716 = pneg %p715
        $region290: #{tpu_custom_call.1} parent=51 // pred_check_branch
          %718 = sbr.rel (%p716) target = $region292
        $region291: #{tpu_custom_call.1} parent=51 // pred_region
          %s719 = scalar_lea.sflag [#allocation3], %s310
          %s720 = smul.u32 8, 2
          %s721 = smul.u32 %s720, 2
          %s722 = sshll.u32 %s721, 4
          %723 = dma.done %s719, %s722
        $region292: #{tpu_custom_call.1} parent=51 // pred_fallthru
          _
        %p724 = scmp.gt.s32.totalorder %s28, 0
        %p725 = scmp.lt.s32.totalorder %s28, 2
        %p726 = pnand %p724, %p725
        %p727 = pneg %p726
        // Predicated region
        $region293: #{tpu_custom_call.1} parent=51 // pred_check
          _
        $region294: #{tpu_custom_call.1} parent=51 // pred_check_branch
          %729 = sbr.rel (%p726) target = $region296
        $region295: #{tpu_custom_call.1} parent=51 // pred_region
          %s730 = scalar_lea.sflag [#allocation3], %s310
          %s731 = smul.u32 8, 2
          %s732 = smul.u32 %s731, 3
          %s733 = sshll.u32 %s732, 4
          %734 = dma.done %s730, %s733
        $region296: #{tpu_custom_call.1} parent=51 // pred_fallthru
          _
        // Predicated region
        $region297: #{tpu_custom_call.1} parent=51 // pred_check
          %p735 = pneg %p311
        $region298: #{tpu_custom_call.1} parent=51 // pred_check_branch
          %737 = sbr.rel (%p735) target = $region300
        $region299: #{tpu_custom_call.1} parent=51 // pred_region
          %738 = vst [vmem:[#allocation2] sm:$0xff] 0.0
          %739 = vst [vmem:[#allocation2 + $0x18] sm:$0xff] 0.0
        $region300: #{tpu_custom_call.1} parent=51 // pred_fallthru
          _
        // Predicated region
        $region301: #{tpu_custom_call.1} parent=51 // pred_check
          %p740 = pneg %p715
        $region302: #{tpu_custom_call.1} parent=51 // pred_check_branch
          %742 = sbr.rel (%p740) target = $region304
        $region303: #{tpu_custom_call.1} parent=51 // pred_region
          %743 = vst [vmem:[#allocation2 + $0x10] sm:$0xff] 0.0
          %744 = vst [vmem:[#allocation2 + $0x28] sm:$0xff] 0.0
        $region304: #{tpu_custom_call.1} parent=51 // pred_fallthru
          _
        %s745 = smul.u32 %s310, 6
        %s746 = smul.addr %s745, 8
        %s747 = scalar_lea.vmem [#allocation2], %s746
        %v748 = vld [vmem:[%s747] sm:$0xff]
        %v749 = vld [vmem:[%s747 + $0x8] sm:$0xff]
        %v750 = vld [vmem:[%s747 + $0x10] sm:$0xff]
        %v751 = vld [vmem:[%s747 + $0x18] sm:$0xff]
        %v752 = vld [vmem:[%s747 + $0x20] sm:$0xff]
        %v753 = vld [vmem:[%s747 + $0x28] sm:$0xff]
        %v754 = vld [vmem:[%s2] sm:$0xff]
        %v755 = vld [vmem:[%s2 + $0x8] sm:$0xff]
        %v756 = vld [vmem:[%s1] sm:$0xff]
        %v757 = vld [vmem:[%s1 + $0x8] sm:$0xff]
        %759 = vset.pattern.permute.xlu0 0
        %760 = vperm.xlu0 %759, %v756
        %v761 = vpop.permute.xlu0 %760
        %764 = vset.pattern.permute.xlu0 0
        %765 = vperm.xlu0 %764, %v757
        %v766 = vpop.permute.xlu0 %765
        %v768 = vmul.f32 %v761, %v748
        %v769 = vmul.f32 %v761, %v749
        %v770 = vmul.f32 %v761, %v750
        %v771 = vmul.f32 %v766, %v751
        %v772 = vmul.f32 %v766, %v752
        %v773 = vmul.f32 %v766, %v753
        %v774 = vand.u32 2147483647, %v768
        %vm775 = vcmp.le.f32.partialorder %v774, 0.7853982
        %vm776 = vcmp.lt.s32.totalorder %v768, 0
        %v777 = vand.u32 %v768, 2139095040
        %v778 = vshrl.u32 %v777, 23
        %v779 = vsub.s32 %v778, 127
        %v780 = vand.u32 2147483647, %v768
        %v781 = vand.u32 %v780, 8388607
        %v782 = vor.u32 %v781, 8388608
        %v783 = vsub.s32 0, %v782
        %v784 = vadd.s32 %v779, 1
        %vm785 = vcmp.gt.s32.totalorder %v784, 0
        %v786 = vsel %vm785, %v784, 0
        %v787 = vshrl.u32 %v786, 5
        %v788 = vand.u32 %v786, 31
        %v789 = vsub.s32 32, %v788
        %v790 = vshrl.u32 683565275, %v789
        %v791 = vshll.u32 683565275, %v788
        %v792 = vshrl.u32 2475754826, %v789
        %v793 = vor.u32 %v791, %v792
        %v794 = vshll.u32 2475754826, %v788
        %v795 = vshrl.u32 2131351028, %v789
        %v796 = vor.u32 %v794, %v795
        %v797 = vshll.u32 2131351028, %v788
        %v798 = vshrl.u32 2102212464, %v789
        %v799 = vor.u32 %v797, %v798
        %v800 = vshll.u32 2102212464, %v788
        %v801 = vshrl.u32 920167782, %v789
        %v802 = vor.u32 %v800, %v801
        %v803 = vshll.u32 920167782, %v788
        %v804 = vshrl.u32 1326507024, %v789
        %v805 = vor.u32 %v803, %v804
        %vm806 = vcmp.lt.s32.totalorder %v787, 1
        %vm807 = vcmp.lt.s32.totalorder %v787, 2
        %vm808 = vcmp.lt.s32.totalorder %v787, 3
        %vm809 = vcmp.lt.s32.totalorder %v787, 4
        %v810 = vsel %vm806, %v790, %v793
        %v811 = vsel %vm809, %v799, 2102212464
        %v812 = vsel %vm808, %v796, %v811
        %v813 = vsel %vm807, %v810, %v812
        %v814 = vsel %vm806, %v793, %v796
        %v815 = vsel %vm809, %v802, 920167782
        %v816 = vsel %vm808, %v799, %v815
        %v817 = vsel %vm807, %v814, %v816
        %v818 = vsel %vm806, %v796, %v799
        %v819 = vsel %vm809, %v805, 1326507024
        %v820 = vsel %vm808, %v802, %v819
        %v821 = vsel %vm807, %v818, %v820
        %v822 = vshll.u32 %v782, 8
        %v823 = vmul.u32.u64.compose %v822, %v821
        %v824 = vextract.low.u32 %v823
        %v825 = vextract.high.u32 %v823
        %v826 = vmul.u32.u64.compose %v822, %v817
        %v827 = vextract.low.u32 %v826
        %v828 = vextract.high.u32 %v826
        %v829 = vmul.u32 %v822, %v813
        %v830 = vadd.s32 %v825, %v827
        %vm831 = vc.u32 %v825, %v827
        %v832 = vadd.s32 %v828, 1
        %v833 = vsel %vm831, %v832, %v828
        %v834 = vadd.s32 %v829, %v833
        %v835 = vadd.s32 %v834, 536870912
        %v836 = vshrl.u32 %v835, 30
        %v837 = vshll.u32 %v836, 30
        %v838 = vsub.s32 %v834, %v837
        %vm839 = vcmp.lt.s32.totalorder %v838, 0
        %v840 = vsub.s32 0, %v838
        %v841 = vsel %vm839, %v840, %v838
        %v842 = vclz %v841
        %v843 = vsub.s32 %v842, 2
        %vm844 = vcmp.gt.s32.totalorder 0, %v843
        %v845 = vsel %vm844, 0, %v843
        %v846 = vsub.s32 32, %v845
        %v847 = vshll.u32 %v838, %v845
        %v848 = vshrl.u32 %v830, %v846
        %v849 = vor.u32 %v847, %v848
        %v850 = vsub.s32 4294967266, %v845
        %v851 = vadd.s32 %v850, 127
        %v852 = vshll.u32 %v851, 23
        %v853 = vor.u32 4788187, %v852
        %v854 = vand.u32 2147483647, %v853
        %v856 = vcvt.s32.f32 %v849
        %v857 = vmul.f32 %v856, %v854
        %v858 = vxor.u32 %v857, 2147483648
        %v859 = vsel %vm776, %v858, %v857
        %v860 = vsub.s32 4, %v836
        %v861 = vsel %vm776, %v860, %v836
        %v862 = vsel %vm775, %v768, %v859
        %v863 = vsel %vm775, 0, %v861
        %v864 = vcosq.f32.pop %v862
        %v865 = vsinq.f32.pop %v862
        %vm866 = vweird.f32 %v768
        %v867 = vand.u32 %v863, 3
        %vm868 = vcmp.lt.s32.totalorder %v867, 2
        %vm869 = vcmp.eq.s32.totalorder %v867, 0
        %v870 = vxor.u32 %v865, 2147483648
        %v871 = vsel %vm869, %v864, %v870
        %vm872 = vcmp.eq.s32.totalorder %v867, 2
        %v873 = vxor.u32 %v864, 2147483648
        %v874 = vsel %vm872, %v873, %v865
        %v875 = vsel %vm868, %v871, %v874
        %v876 = vsel %vm866, nan, %v875
        %v877 = vand.u32 2147483647, %v769
        %vm878 = vcmp.le.f32.partialorder %v877, 0.7853982
        %vm879 = vcmp.lt.s32.totalorder %v769, 0
        %v880 = vand.u32 %v769, 2139095040
        %v881 = vshrl.u32 %v880, 23
        %v882 = vsub.s32 %v881, 127
        %v883 = vand.u32 2147483647, %v769
        %v884 = vand.u32 %v883, 8388607
        %v885 = vor.u32 %v884, 8388608
        %v886 = vsub.s32 0, %v885
        %v887 = vadd.s32 %v882, 1
        %vm888 = vcmp.gt.s32.totalorder %v887, 0
        %v889 = vsel %vm888, %v887, 0
        %v890 = vshrl.u32 %v889, 5
        %v891 = vand.u32 %v889, 31
        %v892 = vsub.s32 32, %v891
        %v893 = vshrl.u32 683565275, %v892
        %v894 = vshll.u32 683565275, %v891
        %v895 = vshrl.u32 2475754826, %v892
        %v896 = vor.u32 %v894, %v895
        %v897 = vshll.u32 2475754826, %v891
        %v898 = vshrl.u32 2131351028, %v892
        %v899 = vor.u32 %v897, %v898
        %v900 = vshll.u32 2131351028, %v891
        %v901 = vshrl.u32 2102212464, %v892
        %v902 = vor.u32 %v900, %v901
        %v903 = vshll.u32 2102212464, %v891
        %v904 = vshrl.u32 920167782, %v892
        %v905 = vor.u32 %v903, %v904
        %v906 = vshll.u32 920167782, %v891
        %v907 = vshrl.u32 1326507024, %v892
        %v908 = vor.u32 %v906, %v907
        %vm909 = vcmp.lt.s32.totalorder %v890, 1
        %vm910 = vcmp.lt.s32.totalorder %v890, 2
        %vm911 = vcmp.lt.s32.totalorder %v890, 3
        %vm912 = vcmp.lt.s32.totalorder %v890, 4
        %v913 = vsel %vm909, %v893, %v896
        %v914 = vsel %vm912, %v902, 2102212464
        %v915 = vsel %vm911, %v899, %v914
        %v916 = vsel %vm910, %v913, %v915
        %v917 = vsel %vm909, %v896, %v899
        %v918 = vsel %vm912, %v905, 920167782
        %v919 = vsel %vm911, %v902, %v918
        %v920 = vsel %vm910, %v917, %v919
        %v921 = vsel %vm909, %v899, %v902
        %v922 = vsel %vm912, %v908, 1326507024
        %v923 = vsel %vm911, %v905, %v922
        %v924 = vsel %vm910, %v921, %v923
        %v925 = vshll.u32 %v885, 8
        %v926 = vmul.u32.u64.compose %v925, %v924
        %v927 = vextract.low.u32 %v926
        %v928 = vextract.high.u32 %v926
        %v929 = vmul.u32.u64.compose %v925, %v920
        %v930 = vextract.low.u32 %v929
        %v931 = vextract.high.u32 %v929
        %v932 = vmul.u32 %v925, %v916
        %v933 = vadd.s32 %v928, %v930
        %vm934 = vc.u32 %v928, %v930
        %v935 = vadd.s32 %v931, 1
        %v936 = vsel %vm934, %v935, %v931
        %v937 = vadd.s32 %v932, %v936
        %v938 = vadd.s32 %v937, 536870912
        %v939 = vshrl.u32 %v938, 30
        %v940 = vshll.u32 %v939, 30
        %v941 = vsub.s32 %v937, %v940
        %vm942 = vcmp.lt.s32.totalorder %v941, 0
        %v943 = vsub.s32 0, %v941
        %v944 = vsel %vm942, %v943, %v941
        %v945 = vclz %v944
        %v946 = vsub.s32 %v945, 2
        %vm947 = vcmp.gt.s32.totalorder 0, %v946
        %v948 = vsel %vm947, 0, %v946
        %v949 = vsub.s32 32, %v948
        %v950 = vshll.u32 %v941, %v948
        %v951 = vshrl.u32 %v933, %v949
        %v952 = vor.u32 %v950, %v951
        %v953 = vsub.s32 4294967266, %v948
        %v954 = vadd.s32 %v953, 127
        %v955 = vshll.u32 %v954, 23
        %v956 = vor.u32 4788187, %v955
        %v957 = vand.u32 2147483647, %v956
        %v959 = vcvt.s32.f32 %v952
        %v960 = vmul.f32 %v959, %v957
        %v961 = vxor.u32 %v960, 2147483648
        %v962 = vsel %vm879, %v961, %v960
        %v963 = vsub.s32 4, %v939
        %v964 = vsel %vm879, %v963, %v939
        %v965 = vsel %vm878, %v769, %v962
        %v966 = vsel %vm878, 0, %v964
        %v967 = vcosq.f32.pop %v965
        %v968 = vsinq.f32.pop %v965
        %vm969 = vweird.f32 %v769
        %v970 = vand.u32 %v966, 3
        %vm971 = vcmp.lt.s32.totalorder %v970, 2
        %vm972 = vcmp.eq.s32.totalorder %v970, 0
        %v973 = vxor.u32 %v968, 2147483648
        %v974 = vsel %vm972, %v967, %v973
        %vm975 = vcmp.eq.s32.totalorder %v970, 2
        %v976 = vxor.u32 %v967, 2147483648
        %v977 = vsel %vm975, %v976, %v968
        %v978 = vsel %vm971, %v974, %v977
        %v979 = vsel %vm969, nan, %v978
        %v980 = vand.u32 2147483647, %v770
        %vm981 = vcmp.le.f32.partialorder %v980, 0.7853982
        %vm982 = vcmp.lt.s32.totalorder %v770, 0
        %v983 = vand.u32 %v770, 2139095040
        %v984 = vshrl.u32 %v983, 23
        %v985 = vsub.s32 %v984, 127
        %v986 = vand.u32 2147483647, %v770
        %v987 = vand.u32 %v986, 8388607
        %v988 = vor.u32 %v987, 8388608
        %v989 = vsub.s32 0, %v988
        %v990 = vadd.s32 %v985, 1
        %vm991 = vcmp.gt.s32.totalorder %v990, 0
        %v992 = vsel %vm991, %v990, 0
        %v993 = vshrl.u32 %v992, 5
        %v994 = vand.u32 %v992, 31
        %v995 = vsub.s32 32, %v994
        %v996 = vshrl.u32 683565275, %v995
        %v997 = vshll.u32 683565275, %v994
        %v998 = vshrl.u32 2475754826, %v995
        %v999 = vor.u32 %v997, %v998
        %v1000 = vshll.u32 2475754826, %v994
        %v1001 = vshrl.u32 2131351028, %v995
        %v1002 = vor.u32 %v1000, %v1001
        %v1003 = vshll.u32 2131351028, %v994
        %v1004 = vshrl.u32 2102212464, %v995
        %v1005 = vor.u32 %v1003, %v1004
        %v1006 = vshll.u32 2102212464, %v994
        %v1007 = vshrl.u32 920167782, %v995
        %v1008 = vor.u32 %v1006, %v1007
        %v1009 = vshll.u32 920167782, %v994
        %v1010 = vshrl.u32 1326507024, %v995
        %v1011 = vor.u32 %v1009, %v1010
        %vm1012 = vcmp.lt.s32.totalorder %v993, 1
        %vm1013 = vcmp.lt.s32.totalorder %v993, 2
        %vm1014 = vcmp.lt.s32.totalorder %v993, 3
        %vm1015 = vcmp.lt.s32.totalorder %v993, 4
        %v1016 = vsel %vm1012, %v996, %v999
        %v1017 = vsel %vm1015, %v1005, 2102212464
        %v1018 = vsel %vm1014, %v1002, %v1017
        %v1019 = vsel %vm1013, %v1016, %v1018
        %v1020 = vsel %vm1012, %v999, %v1002
        %v1021 = vsel %vm1015, %v1008, 920167782
        %v1022 = vsel %vm1014, %v1005, %v1021
        %v1023 = vsel %vm1013, %v1020, %v1022
        %v1024 = vsel %vm1012, %v1002, %v1005
        %v1025 = vsel %vm1015, %v1011, 1326507024
        %v1026 = vsel %vm1014, %v1008, %v1025
        %v1027 = vsel %vm1013, %v1024, %v1026
        %v1028 = vshll.u32 %v988, 8
        %v1029 = vmul.u32.u64.compose %v1028, %v1027
        %v1030 = vextract.low.u32 %v1029
        %v1031 = vextract.high.u32 %v1029
        %v1032 = vmul.u32.u64.compose %v1028, %v1023
        %v1033 = vextract.low.u32 %v1032
        %v1034 = vextract.high.u32 %v1032
        %v1035 = vmul.u32 %v1028, %v1019
        %v1036 = vadd.s32 %v1031, %v1033
        %vm1037 = vc.u32 %v1031, %v1033
        %v1038 = vadd.s32 %v1034, 1
        %v1039 = vsel %vm1037, %v1038, %v1034
        %v1040 = vadd.s32 %v1035, %v1039
        %v1041 = vadd.s32 %v1040, 536870912
        %v1042 = vshrl.u32 %v1041, 30
        %v1043 = vshll.u32 %v1042, 30
        %v1044 = vsub.s32 %v1040, %v1043
        %vm1045 = vcmp.lt.s32.totalorder %v1044, 0
        %v1046 = vsub.s32 0, %v1044
        %v1047 = vsel %vm1045, %v1046, %v1044
        %v1048 = vclz %v1047
        %v1049 = vsub.s32 %v1048, 2
        %vm1050 = vcmp.gt.s32.totalorder 0, %v1049
        %v1051 = vsel %vm1050, 0, %v1049
        %v1052 = vsub.s32 32, %v1051
        %v1053 = vshll.u32 %v1044, %v1051
        %v1054 = vshrl.u32 %v1036, %v1052
        %v1055 = vor.u32 %v1053, %v1054
        %v1056 = vsub.s32 4294967266, %v1051
        %v1057 = vadd.s32 %v1056, 127
        %v1058 = vshll.u32 %v1057, 23
        %v1059 = vor.u32 4788187, %v1058
        %v1060 = vand.u32 2147483647, %v1059
        %v1062 = vcvt.s32.f32 %v1055
        %v1063 = vmul.f32 %v1062, %v1060
        %v1064 = vxor.u32 %v1063, 2147483648
        %v1065 = vsel %vm982, %v1064, %v1063
        %v1066 = vsub.s32 4, %v1042
        %v1067 = vsel %vm982, %v1066, %v1042
        %v1068 = vsel %vm981, %v770, %v1065
        %v1069 = vsel %vm981, 0, %v1067
        %v1070 = vcosq.f32.pop %v1068
        %v1071 = vsinq.f32.pop %v1068
        %vm1072 = vweird.f32 %v770
        %v1073 = vand.u32 %v1069, 3
        %vm1074 = vcmp.lt.s32.totalorder %v1073, 2
        %vm1075 = vcmp.eq.s32.totalorder %v1073, 0
        %v1076 = vxor.u32 %v1071, 2147483648
        %v1077 = vsel %vm1075, %v1070, %v1076
        %vm1078 = vcmp.eq.s32.totalorder %v1073, 2
        %v1079 = vxor.u32 %v1070, 2147483648
        %v1080 = vsel %vm1078, %v1079, %v1071
        %v1081 = vsel %vm1074, %v1077, %v1080
        %v1082 = vsel %vm1072, nan, %v1081
        %v1083 = vand.u32 2147483647, %v771
        %vm1084 = vcmp.le.f32.partialorder %v1083, 0.7853982
        %vm1085 = vcmp.lt.s32.totalorder %v771, 0
        %v1086 = vand.u32 %v771, 2139095040
        %v1087 = vshrl.u32 %v1086, 23
        %v1088 = vsub.s32 %v1087, 127
        %v1089 = vand.u32 2147483647, %v771
        %v1090 = vand.u32 %v1089, 8388607
        %v1091 = vor.u32 %v1090, 8388608
        %v1092 = vsub.s32 0, %v1091
        %v1093 = vadd.s32 %v1088, 1
        %vm1094 = vcmp.gt.s32.totalorder %v1093, 0
        %v1095 = vsel %vm1094, %v1093, 0
        %v1096 = vshrl.u32 %v1095, 5
        %v1097 = vand.u32 %v1095, 31
        %v1098 = vsub.s32 32, %v1097
        %v1099 = vshrl.u32 683565275, %v1098
        %v1100 = vshll.u32 683565275, %v1097
        %v1101 = vshrl.u32 2475754826, %v1098
        %v1102 = vor.u32 %v1100, %v1101
        %v1103 = vshll.u32 2475754826, %v1097
        %v1104 = vshrl.u32 2131351028, %v1098
        %v1105 = vor.u32 %v1103, %v1104
        %v1106 = vshll.u32 2131351028, %v1097
        %v1107 = vshrl.u32 2102212464, %v1098
        %v1108 = vor.u32 %v1106, %v1107
        %v1109 = vshll.u32 2102212464, %v1097
        %v1110 = vshrl.u32 920167782, %v1098
        %v1111 = vor.u32 %v1109, %v1110
        %v1112 = vshll.u32 920167782, %v1097
        %v1113 = vshrl.u32 1326507024, %v1098
        %v1114 = vor.u32 %v1112, %v1113
        %vm1115 = vcmp.lt.s32.totalorder %v1096, 1
        %vm1116 = vcmp.lt.s32.totalorder %v1096, 2
        %vm1117 = vcmp.lt.s32.totalorder %v1096, 3
        %vm1118 = vcmp.lt.s32.totalorder %v1096, 4
        %v1119 = vsel %vm1115, %v1099, %v1102
        %v1120 = vsel %vm1118, %v1108, 2102212464
        %v1121 = vsel %vm1117, %v1105, %v1120
        %v1122 = vsel %vm1116, %v1119, %v1121
        %v1123 = vsel %vm1115, %v1102, %v1105
        %v1124 = vsel %vm1118, %v1111, 920167782
        %v1125 = vsel %vm1117, %v1108, %v1124
        %v1126 = vsel %vm1116, %v1123, %v1125
        %v1127 = vsel %vm1115, %v1105, %v1108
        %v1128 = vsel %vm1118, %v1114, 1326507024
        %v1129 = vsel %vm1117, %v1111, %v1128
        %v1130 = vsel %vm1116, %v1127, %v1129
        %v1131 = vshll.u32 %v1091, 8
        %v1132 = vmul.u32.u64.compose %v1131, %v1130
        %v1133 = vextract.low.u32 %v1132
        %v1134 = vextract.high.u32 %v1132
        %v1135 = vmul.u32.u64.compose %v1131, %v1126
        %v1136 = vextract.low.u32 %v1135
        %v1137 = vextract.high.u32 %v1135
        %v1138 = vmul.u32 %v1131, %v1122
        %v1139 = vadd.s32 %v1134, %v1136
        %vm1140 = vc.u32 %v1134, %v1136
        %v1141 = vadd.s32 %v1137, 1
        %v1142 = vsel %vm1140, %v1141, %v1137
        %v1143 = vadd.s32 %v1138, %v1142
        %v1144 = vadd.s32 %v1143, 536870912
        %v1145 = vshrl.u32 %v1144, 30
        %v1146 = vshll.u32 %v1145, 30
        %v1147 = vsub.s32 %v1143, %v1146
        %vm1148 = vcmp.lt.s32.totalorder %v1147, 0
        %v1149 = vsub.s32 0, %v1147
        %v1150 = vsel %vm1148, %v1149, %v1147
        %v1151 = vclz %v1150
        %v1152 = vsub.s32 %v1151, 2
        %vm1153 = vcmp.gt.s32.totalorder 0, %v1152
        %v1154 = vsel %vm1153, 0, %v1152
        %v1155 = vsub.s32 32, %v1154
        %v1156 = vshll.u32 %v1147, %v1154
        %v1157 = vshrl.u32 %v1139, %v1155
        %v1158 = vor.u32 %v1156, %v1157
        %v1159 = vsub.s32 4294967266, %v1154
        %v1160 = vadd.s32 %v1159, 127
        %v1161 = vshll.u32 %v1160, 23
        %v1162 = vor.u32 4788187, %v1161
        %v1163 = vand.u32 2147483647, %v1162
        %v1165 = vcvt.s32.f32 %v1158
        %v1166 = vmul.f32 %v1165, %v1163
        %v1167 = vxor.u32 %v1166, 2147483648
        %v1168 = vsel %vm1085, %v1167, %v1166
        %v1169 = vsub.s32 4, %v1145
        %v1170 = vsel %vm1085, %v1169, %v1145
        %v1171 = vsel %vm1084, %v771, %v1168
        %v1172 = vsel %vm1084, 0, %v1170
        %v1173 = vcosq.f32.pop %v1171
        %v1174 = vsinq.f32.pop %v1171
        %vm1175 = vweird.f32 %v771
        %v1176 = vand.u32 %v1172, 3
        %vm1177 = vcmp.lt.s32.totalorder %v1176, 2
        %vm1178 = vcmp.eq.s32.totalorder %v1176, 0
        %v1179 = vxor.u32 %v1174, 2147483648
        %v1180 = vsel %vm1178, %v1173, %v1179
        %vm1181 = vcmp.eq.s32.totalorder %v1176, 2
        %v1182 = vxor.u32 %v1173, 2147483648
        %v1183 = vsel %vm1181, %v1182, %v1174
        %v1184 = vsel %vm1177, %v1180, %v1183
        %v1185 = vsel %vm1175, nan, %v1184
        %v1186 = vand.u32 2147483647, %v772
        %vm1187 = vcmp.le.f32.partialorder %v1186, 0.7853982
        %vm1188 = vcmp.lt.s32.totalorder %v772, 0
        %v1189 = vand.u32 %v772, 2139095040
        %v1190 = vshrl.u32 %v1189, 23
        %v1191 = vsub.s32 %v1190, 127
        %v1192 = vand.u32 2147483647, %v772
        %v1193 = vand.u32 %v1192, 8388607
        %v1194 = vor.u32 %v1193, 8388608
        %v1195 = vsub.s32 0, %v1194
        %v1196 = vadd.s32 %v1191, 1
        %vm1197 = vcmp.gt.s32.totalorder %v1196, 0
        %v1198 = vsel %vm1197, %v1196, 0
        %v1199 = vshrl.u32 %v1198, 5
        %v1200 = vand.u32 %v1198, 31
        %v1201 = vsub.s32 32, %v1200
        %v1202 = vshrl.u32 683565275, %v1201
        %v1203 = vshll.u32 683565275, %v1200
        %v1204 = vshrl.u32 2475754826, %v1201
        %v1205 = vor.u32 %v1203, %v1204
        %v1206 = vshll.u32 2475754826, %v1200
        %v1207 = vshrl.u32 2131351028, %v1201
        %v1208 = vor.u32 %v1206, %v1207
        %v1209 = vshll.u32 2131351028, %v1200
        %v1210 = vshrl.u32 2102212464, %v1201
        %v1211 = vor.u32 %v1209, %v1210
        %v1212 = vshll.u32 2102212464, %v1200
        %v1213 = vshrl.u32 920167782, %v1201
        %v1214 = vor.u32 %v1212, %v1213
        %v1215 = vshll.u32 920167782, %v1200
        %v1216 = vshrl.u32 1326507024, %v1201
        %v1217 = vor.u32 %v1215, %v1216
        %vm1218 = vcmp.lt.s32.totalorder %v1199, 1
        %vm1219 = vcmp.lt.s32.totalorder %v1199, 2
        %vm1220 = vcmp.lt.s32.totalorder %v1199, 3
        %vm1221 = vcmp.lt.s32.totalorder %v1199, 4
        %v1222 = vsel %vm1218, %v1202, %v1205
        %v1223 = vsel %vm1221, %v1211, 2102212464
        %v1224 = vsel %vm1220, %v1208, %v1223
        %v1225 = vsel %vm1219, %v1222, %v1224
        %v1226 = vsel %vm1218, %v1205, %v1208
        %v1227 = vsel %vm1221, %v1214, 920167782
        %v1228 = vsel %vm1220, %v1211, %v1227
        %v1229 = vsel %vm1219, %v1226, %v1228
        %v1230 = vsel %vm1218, %v1208, %v1211
        %v1231 = vsel %vm1221, %v1217, 1326507024
        %v1232 = vsel %vm1220, %v1214, %v1231
        %v1233 = vsel %vm1219, %v1230, %v1232
        %v1234 = vshll.u32 %v1194, 8
        %v1235 = vmul.u32.u64.compose %v1234, %v1233
        %v1236 = vextract.low.u32 %v1235
        %v1237 = vextract.high.u32 %v1235
        %v1238 = vmul.u32.u64.compose %v1234, %v1229
        %v1239 = vextract.low.u32 %v1238
        %v1240 = vextract.high.u32 %v1238
        %v1241 = vmul.u32 %v1234, %v1225
        %v1242 = vadd.s32 %v1237, %v1239
        %vm1243 = vc.u32 %v1237, %v1239
        %v1244 = vadd.s32 %v1240, 1
        %v1245 = vsel %vm1243, %v1244, %v1240
        %v1246 = vadd.s32 %v1241, %v1245
        %v1247 = vadd.s32 %v1246, 536870912
        %v1248 = vshrl.u32 %v1247, 30
        %v1249 = vshll.u32 %v1248, 30
        %v1250 = vsub.s32 %v1246, %v1249
        %vm1251 = vcmp.lt.s32.totalorder %v1250, 0
        %v1252 = vsub.s32 0, %v1250
        %v1253 = vsel %vm1251, %v1252, %v1250
        %v1254 = vclz %v1253
        %v1255 = vsub.s32 %v1254, 2
        %vm1256 = vcmp.gt.s32.totalorder 0, %v1255
        %v1257 = vsel %vm1256, 0, %v1255
        %v1258 = vsub.s32 32, %v1257
        %v1259 = vshll.u32 %v1250, %v1257
        %v1260 = vshrl.u32 %v1242, %v1258
        %v1261 = vor.u32 %v1259, %v1260
        %v1262 = vsub.s32 4294967266, %v1257
        %v1263 = vadd.s32 %v1262, 127
        %v1264 = vshll.u32 %v1263, 23
        %v1265 = vor.u32 4788187, %v1264
        %v1266 = vand.u32 2147483647, %v1265
        %v1268 = vcvt.s32.f32 %v1261
        %v1269 = vmul.f32 %v1268, %v1266
        %v1270 = vxor.u32 %v1269, 2147483648
        %v1271 = vsel %vm1188, %v1270, %v1269
        %v1272 = vsub.s32 4, %v1248
        %v1273 = vsel %vm1188, %v1272, %v1248
        %v1274 = vsel %vm1187, %v772, %v1271
        %v1275 = vsel %vm1187, 0, %v1273
        %v1276 = vcosq.f32.pop %v1274
        %v1277 = vsinq.f32.pop %v1274
        %vm1278 = vweird.f32 %v772
        %v1279 = vand.u32 %v1275, 3
        %vm1280 = vcmp.lt.s32.totalorder %v1279, 2
        %vm1281 = vcmp.eq.s32.totalorder %v1279, 0
        %v1282 = vxor.u32 %v1277, 2147483648
        %v1283 = vsel %vm1281, %v1276, %v1282
        %vm1284 = vcmp.eq.s32.totalorder %v1279, 2
        %v1285 = vxor.u32 %v1276, 2147483648
        %v1286 = vsel %vm1284, %v1285, %v1277
        %v1287 = vsel %vm1280, %v1283, %v1286
        %v1288 = vsel %vm1278, nan, %v1287
        %v1289 = vand.u32 2147483647, %v773
        %vm1290 = vcmp.le.f32.partialorder %v1289, 0.7853982
        %vm1291 = vcmp.lt.s32.totalorder %v773, 0
        %v1292 = vand.u32 %v773, 2139095040
        %v1293 = vshrl.u32 %v1292, 23
        %v1294 = vsub.s32 %v1293, 127
        %v1295 = vand.u32 2147483647, %v773
        %v1296 = vand.u32 %v1295, 8388607
        %v1297 = vor.u32 %v1296, 8388608
        %v1298 = vsub.s32 0, %v1297
        %v1299 = vadd.s32 %v1294, 1
        %vm1300 = vcmp.gt.s32.totalorder %v1299, 0
        %v1301 = vsel %vm1300, %v1299, 0
        %v1302 = vshrl.u32 %v1301, 5
        %v1303 = vand.u32 %v1301, 31
        %v1304 = vsub.s32 32, %v1303
        %v1305 = vshrl.u32 683565275, %v1304
        %v1306 = vshll.u32 683565275, %v1303
        %v1307 = vshrl.u32 2475754826, %v1304
        %v1308 = vor.u32 %v1306, %v1307
        %v1309 = vshll.u32 2475754826, %v1303
        %v1310 = vshrl.u32 2131351028, %v1304
        %v1311 = vor.u32 %v1309, %v1310
        %v1312 = vshll.u32 2131351028, %v1303
        %v1313 = vshrl.u32 2102212464, %v1304
        %v1314 = vor.u32 %v1312, %v1313
        %v1315 = vshll.u32 2102212464, %v1303
        %v1316 = vshrl.u32 920167782, %v1304
        %v1317 = vor.u32 %v1315, %v1316
        %v1318 = vshll.u32 920167782, %v1303
        %v1319 = vshrl.u32 1326507024, %v1304
        %v1320 = vor.u32 %v1318, %v1319
        %vm1321 = vcmp.lt.s32.totalorder %v1302, 1
        %vm1322 = vcmp.lt.s32.totalorder %v1302, 2
        %vm1323 = vcmp.lt.s32.totalorder %v1302, 3
        %vm1324 = vcmp.lt.s32.totalorder %v1302, 4
        %v1325 = vsel %vm1321, %v1305, %v1308
        %v1326 = vsel %vm1324, %v1314, 2102212464
        %v1327 = vsel %vm1323, %v1311, %v1326
        %v1328 = vsel %vm1322, %v1325, %v1327
        %v1329 = vsel %vm1321, %v1308, %v1311
        %v1330 = vsel %vm1324, %v1317, 920167782
        %v1331 = vsel %vm1323, %v1314, %v1330
        %v1332 = vsel %vm1322, %v1329, %v1331
        %v1333 = vsel %vm1321, %v1311, %v1314
        %v1334 = vsel %vm1324, %v1320, 1326507024
        %v1335 = vsel %vm1323, %v1317, %v1334
        %v1336 = vsel %vm1322, %v1333, %v1335
        %v1337 = vshll.u32 %v1297, 8
        %v1338 = vmul.u32.u64.compose %v1337, %v1336
        %v1339 = vextract.low.u32 %v1338
        %v1340 = vextract.high.u32 %v1338
        %v1341 = vmul.u32.u64.compose %v1337, %v1332
        %v1342 = vextract.low.u32 %v1341
        %v1343 = vextract.high.u32 %v1341
        %v1344 = vmul.u32 %v1337, %v1328
        %v1345 = vadd.s32 %v1340, %v1342
        %vm1346 = vc.u32 %v1340, %v1342
        %v1347 = vadd.s32 %v1343, 1
        %v1348 = vsel %vm1346, %v1347, %v1343
        %v1349 = vadd.s32 %v1344, %v1348
        %v1350 = vadd.s32 %v1349, 536870912
        %v1351 = vshrl.u32 %v1350, 30
        %v1352 = vshll.u32 %v1351, 30
        %v1353 = vsub.s32 %v1349, %v1352
        %vm1354 = vcmp.lt.s32.totalorder %v1353, 0
        %v1355 = vsub.s32 0, %v1353
        %v1356 = vsel %vm1354, %v1355, %v1353
        %v1357 = vclz %v1356
        %v1358 = vsub.s32 %v1357, 2
        %vm1359 = vcmp.gt.s32.totalorder 0, %v1358
        %v1360 = vsel %vm1359, 0, %v1358
        %v1361 = vsub.s32 32, %v1360
        %v1362 = vshll.u32 %v1353, %v1360
        %v1363 = vshrl.u32 %v1345, %v1361
        %v1364 = vor.u32 %v1362, %v1363
        %v1365 = vsub.s32 4294967266, %v1360
        %v1366 = vadd.s32 %v1365, 127
        %v1367 = vshll.u32 %v1366, 23
        %v1368 = vor.u32 4788187, %v1367
        %v1369 = vand.u32 2147483647, %v1368
        %v1371 = vcvt.s32.f32 %v1364
        %v1372 = vmul.f32 %v1371, %v1369
        %v1373 = vxor.u32 %v1372, 2147483648
        %v1374 = vsel %vm1291, %v1373, %v1372
        %v1375 = vsub.s32 4, %v1351
        %v1376 = vsel %vm1291, %v1375, %v1351
        %v1377 = vsel %vm1290, %v773, %v1374
        %v1378 = vsel %vm1290, 0, %v1376
        %v1379 = vcosq.f32.pop %v1377
        %v1380 = vsinq.f32.pop %v1377
        %vm1381 = vweird.f32 %v773
        %v1382 = vand.u32 %v1378, 3
        %vm1383 = vcmp.lt.s32.totalorder %v1382, 2
        %vm1384 = vcmp.eq.s32.totalorder %v1382, 0
        %v1385 = vxor.u32 %v1380, 2147483648
        %v1386 = vsel %vm1384, %v1379, %v1385
        %vm1387 = vcmp.eq.s32.totalorder %v1382, 2
        %v1388 = vxor.u32 %v1379, 2147483648
        %v1389 = vsel %vm1387, %v1388, %v1380
        %v1390 = vsel %vm1383, %v1386, %v1389
        %v1391 = vsel %vm1381, nan, %v1390
        %v1392 = vsub.f32 1.0, %v876
        %v1393 = vsub.f32 1.0, %v979
        %v1394 = vsub.f32 1.0, %v1082
        %v1395 = vsub.f32 1.0, %v1185
        %v1396 = vsub.f32 1.0, %v1288
        %v1397 = vsub.f32 1.0, %v1391
        %1399 = vset.pattern.permute.xlu0 0
        %1400 = vperm.xlu0 %1399, %v754
        %v1401 = vpop.permute.xlu0 %1400
        %1404 = vset.pattern.permute.xlu0 0
        %1405 = vperm.xlu0 %1404, %v755
        %v1406 = vpop.permute.xlu0 %1405
        %v1408 = vmul.f32 %v1401, %v1392
        %v1409 = vmul.f32 %v1401, %v1393
        %v1410 = vmul.f32 %v1401, %v1394
        %v1411 = vmul.f32 %v1406, %v1395
        %v1412 = vmul.f32 %v1406, %v1396
        %v1413 = vmul.f32 %v1406, %v1397
        %v1414 = vadd.f32 %v748, %v1408
        %v1415 = vadd.f32 %v749, %v1409
        %v1416 = vadd.f32 %v750, %v1410
        %v1417 = vadd.f32 %v751, %v1411
        %v1418 = vadd.f32 %v752, %v1412
        %v1419 = vadd.f32 %v753, %v1413
        %1424 = vrot.lane.b32.xlu0 %v1414, 127
        %v1425 = vpop.permute.xlu0 %1424
        %1426 = vrot.lane.b32.xlu0 %v1415, 127
        %v1427 = vpop.permute.xlu0 %1426
        %1428 = vrot.lane.b32.xlu0 %v1417, 127
        %v1429 = vpop.permute.xlu0 %1428
        %1430 = vrot.lane.b32.xlu0 %v1418, 127
        %v1431 = vpop.permute.xlu0 %1430
        %vm1432 = vcmask 1039360
        %v1433 = vsel %vm1432, %v1425, %v1427
        %v1434 = vsel %vm1432, %v1429, %v1431
        %1435 = vrot.lane.b32.xlu0 %v1414, 126
        %v1436 = vpop.permute.xlu0 %1435
        %1437 = vrot.lane.b32.xlu0 %v1415, 126
        %v1438 = vpop.permute.xlu0 %1437
        %1439 = vrot.lane.b32.xlu0 %v1417, 126
        %v1440 = vpop.permute.xlu0 %1439
        %1441 = vrot.lane.b32.xlu0 %v1418, 126
        %v1442 = vpop.permute.xlu0 %1441
        %vm1443 = vcmask 1031168
        %v1444 = vsel %vm1443, %v1436, %v1438
        %v1445 = vsel %vm1443, %v1440, %v1442
        %1446 = vrot.lane.b32.xlu0 %v1415, 125
        %v1447 = vpop.permute.xlu0 %1446
        %1448 = vrot.lane.b32.xlu0 %v1418, 125
        %v1449 = vpop.permute.xlu0 %1448
        %1452 = vrot.lane.b32.xlu0 %v1415, 124
        %v1453 = vpop.permute.xlu0 %1452
        %1454 = vrot.lane.b32.xlu0 %v1416, 124
        %v1455 = vpop.permute.xlu0 %1454
        %1456 = vrot.lane.b32.xlu0 %v1418, 124
        %v1457 = vpop.permute.xlu0 %1456
        %1458 = vrot.lane.b32.xlu0 %v1419, 124
        %v1459 = vpop.permute.xlu0 %1458
        %vm1460 = vcmask 1014784
        %v1461 = vsel %vm1460, %v1453, %v1455
        %v1462 = vsel %vm1460, %v1457, %v1459
        %1463 = vrot.lane.b32.xlu0 %v1415, 123
        %v1464 = vpop.permute.xlu0 %1463
        %1465 = vrot.lane.b32.xlu0 %v1416, 123
        %v1466 = vpop.permute.xlu0 %1465
        %1467 = vrot.lane.b32.xlu0 %v1418, 123
        %v1468 = vpop.permute.xlu0 %1467
        %1469 = vrot.lane.b32.xlu0 %v1419, 123
        %v1470 = vpop.permute.xlu0 %1469
        %vm1471 = vcmask 1006592
        %v1472 = vsel %vm1471, %v1464, %v1466
        %v1473 = vsel %vm1471, %v1468, %v1470
        %1474 = vrot.lane.b32.xlu0 %v1415, 122
        %v1475 = vpop.permute.xlu0 %1474
        %1476 = vrot.lane.b32.xlu0 %v1416, 122
        %v1477 = vpop.permute.xlu0 %1476
        %1478 = vrot.lane.b32.xlu0 %v1418, 122
        %v1479 = vpop.permute.xlu0 %1478
        %1480 = vrot.lane.b32.xlu0 %v1419, 122
        %v1481 = vpop.permute.xlu0 %1480
        %vm1482 = vcmask 998400
        %v1483 = vsel %vm1482, %v1475, %v1477
        %v1484 = vsel %vm1482, %v1479, %v1481
        %v1485 = vld [vmem:[%s3] sm:$0xff]
        %v1486 = vld [vmem:[%s3 + $0x8] sm:$0xff]
        %v1487 = vld [vmem:[%s4] sm:$0xff]
        %v1488 = vld [vmem:[%s4 + $0x8] sm:$0xff]
        %1490 = vset.pattern.permute.xlu0 0
        %1491 = vperm.xlu0 %1490, %v1487
        %v1492 = vpop.permute.xlu0 %1491
        %1495 = vset.pattern.permute.xlu0 0
        %1496 = vperm.xlu0 %1495, %v1488
        %v1497 = vpop.permute.xlu0 %1496
        %1499 = vrot.lane.b32.xlu0 %v1414, 3
        %v1500 = vpop.permute.xlu0 %1499
        %1501 = vrot.lane.b32.xlu0 %v1415, 3
        %v1502 = vpop.permute.xlu0 %1501
        %1503 = vrot.lane.b32.xlu0 %v1417, 3
        %v1504 = vpop.permute.xlu0 %1503
        %1505 = vrot.lane.b32.xlu0 %v1418, 3
        %v1506 = vpop.permute.xlu0 %1505
        %1507 = vrot.lane.b32.xlu0 %v1433, 3
        %v1508 = vpop.permute.xlu0 %1507
        %1509 = vrot.lane.b32.xlu0 %v1427, 3
        %v1510 = vpop.permute.xlu0 %1509
        %1511 = vrot.lane.b32.xlu0 %v1434, 3
        %v1512 = vpop.permute.xlu0 %1511
        %1513 = vrot.lane.b32.xlu0 %v1431, 3
        %v1514 = vpop.permute.xlu0 %1513
        %1515 = vrot.lane.b32.xlu0 %v1444, 3
        %v1516 = vpop.permute.xlu0 %1515
        %1517 = vrot.lane.b32.xlu0 %v1438, 3
        %v1518 = vpop.permute.xlu0 %1517
        %1519 = vrot.lane.b32.xlu0 %v1445, 3
        %v1520 = vpop.permute.xlu0 %1519
        %1521 = vrot.lane.b32.xlu0 %v1442, 3
        %v1522 = vpop.permute.xlu0 %1521
        %1523 = vrot.lane.b32.xlu0 %v1447, 3
        %v1524 = vpop.permute.xlu0 %1523
        %1525 = vrot.lane.b32.xlu0 %v1449, 3
        %v1526 = vpop.permute.xlu0 %1525
        %1527 = vrot.lane.b32.xlu0 %v1453, 3
        %v1528 = vpop.permute.xlu0 %1527
        %1529 = vrot.lane.b32.xlu0 %v1461, 3
        %v1530 = vpop.permute.xlu0 %1529
        %1531 = vrot.lane.b32.xlu0 %v1457, 3
        %v1532 = vpop.permute.xlu0 %1531
        %1533 = vrot.lane.b32.xlu0 %v1462, 3
        %v1534 = vpop.permute.xlu0 %1533
        %1535 = vrot.lane.b32.xlu0 %v1464, 3
        %v1536 = vpop.permute.xlu0 %1535
        %1537 = vrot.lane.b32.xlu0 %v1472, 3
        %v1538 = vpop.permute.xlu0 %1537
        %1539 = vrot.lane.b32.xlu0 %v1468, 3
        %v1540 = vpop.permute.xlu0 %1539
        %1541 = vrot.lane.b32.xlu0 %v1473, 3
        %v1542 = vpop.permute.xlu0 %1541
        %1543 = vrot.lane.b32.xlu0 %v1475, 3
        %v1544 = vpop.permute.xlu0 %1543
        %1545 = vrot.lane.b32.xlu0 %v1483, 3
        %v1546 = vpop.permute.xlu0 %1545
        %1547 = vrot.lane.b32.xlu0 %v1479, 3
        %v1548 = vpop.permute.xlu0 %1547
        %1549 = vrot.lane.b32.xlu0 %v1484, 3
        %v1550 = vpop.permute.xlu0 %1549
        %vm1551 = vcmask 23552
        %v1552 = vsel %vm1551, %v1500, %v1502
        %v1553 = vsel %vm1551, %v1504, %v1506
        %v1554 = vsel %vm1551, %v1508, %v1510
        %v1555 = vsel %vm1551, %v1512, %v1514
        %v1556 = vsel %vm1551, %v1516, %v1518
        %v1557 = vsel %vm1551, %v1520, %v1522
        %v1558 = vsel %vm1551, %v1528, %v1530
        %v1559 = vsel %vm1551, %v1532, %v1534
        %v1560 = vsel %vm1551, %v1536, %v1538
        %v1561 = vsel %vm1551, %v1540, %v1542
        %v1562 = vsel %vm1551, %v1544, %v1546
        %v1563 = vsel %vm1551, %v1548, %v1550
        %vm1578 = vcmask 916480
        %v1580 = vsel %vm1578, %v1485, 0
        %v1583 = vsel %vm1578, %v1486, 0
        %1585 = vmatprep.subr.mxu0 0.0
        %1586 = vmatpush1.msra.mxu0 %v1552
        %1587 = vmatprep.subr.mxu0 0.0
        %1588 = vmatpush1.msra.mxu0 %v1553
        %1589 = vmatprep.subr.mxu0 0.0
        %1590 = vmatpush1.msra.mxu0 %v1554
        %1591 = vmatprep.subr.mxu0 0.0
        %1592 = vmatpush1.msra.mxu0 %v1555
        %1593 = vmatprep.subr.mxu0 0.0
        %1594 = vmatpush1.msra.mxu0 %v1556
        %1595 = vmatprep.subr.mxu0 0.0
        %1596 = vmatpush1.msra.mxu0 %v1557
        %1597 = vmatprep.subr.mxu0 0.0
        %1598 = vmatpush1.msra.mxu0 %v1524
        %1599 = vmatprep.subr.mxu0 0.0
        %1600 = vmatpush1.msra.mxu0 %v1526
        %1601 = vmatprep.subr.mxu0 0.0
        %1602 = vmatpush1.msra.mxu0 %v1558
        %1603 = vmatprep.subr.mxu0 0.0
        %1604 = vmatpush1.msra.mxu0 %v1559
        %1605 = vmatprep.subr.mxu0 0.0
        %1606 = vmatpush1.msra.mxu0 %v1560
        %1607 = vmatprep.subr.mxu0 0.0
        %1608 = vmatpush1.msra.mxu0 %v1561
        %1609 = vmatprep.subr.mxu0 0.0
        %1610 = vmatpush1.msra.mxu0 %v1562
        %1611 = vmatprep.subr.mxu0 0.0
        %1612 = vmatpush1.msra.mxu0 %v1563
        %1613 = vmatprep.subr.mxu0 0.0
        %1614 = vmatpush1.msra.mxu0 0.0
        %1615 = vmatprep.subr.mxu0 0.0
        %1616 = vmatpush1.msra.mxu0 0.0
        %1617 = vmatprep.subr.mxu0 0.0
        %1618 = vmatpush1.msra.mxu0 0.0
        %1619 = vmatprep.subr.mxu0 0.0
        %1620 = vmatpush1.msra.mxu0 0.0
        %1621 = vmatprep.subr.mxu0 0.0
        %1622 = vmatpush1.msra.mxu0 0.0
        %1623 = vmatprep.subr.mxu0 0.0
        %1624 = vmatpush1.msra.mxu0 0.0
        %1625 = vmatprep.subr.mxu0 0.0
        %1626 = vmatpush1.msra.mxu0 0.0
        %1627 = vmatprep.subr.mxu0 0.0
        %1628 = vmatpush1.msra.mxu0 0.0
        %1629 = vmatprep.subr.mxu0 0.0
        %1630 = vmatpush1.msra.mxu0 0.0
        %1631 = vmatprep.subr.mxu0 0.0
        %1632 = vmatpush1.msra.mxu0 0.0
        %1633 = vmatprep.subr.mxu0 0.0
        %1634 = vmatpush1.msra.mxu0 0.0
        %1635 = vmatprep.subr.mxu0 0.0
        %1636 = vmatpush1.msra.mxu0 0.0
        %1637 = vmatprep.subr.mxu0 0.0
        %1638 = vmatpush1.msra.mxu0 0.0
        %1639 = vmatprep.subr.mxu0 0.0
        %1640 = vmatpush1.msra.mxu0 0.0
        %1641 = vmatprep.subr.mxu0 0.0
        %1642 = vmatpush1.msra.mxu0 0.0
        %1643 = vmatprep.subr.mxu0 0.0
        %1644 = vmatpush1.msra.mxu0 0.0
        %1645 = vmatprep.subr.mxu0 0.0
        %1646 = vmatpush1.msra.mxu0 0.0
        %1647 = vmatprep.subr.mxu0 0.0
        %1648 = vmatpush1.msra.mxu0 0.0
        %1649 = vmatprep.mubr.f32.mxu0 0.0
        %1650 = vmatmul.mubr.f32.gmra.mrb[0].mxu0 %v1580
        %v1651 = vpop.f32.mrb[0].mxu0
        %v1652 = vadd.f32 %v1492, %v1651
        %v1653 = vpop.f32.mrb[0].mxu0
        %1654 = vmatprep.mubr.f32.mxu0 0.0
        %1655 = vmatmul.mubr.f32.gmra.mrb[0].mxu0 %v1583
        %v1656 = vpop.f32.mrb[0].mxu0
        %v1657 = vadd.f32 %v1497, %v1656
        %v1658 = vpop.f32.mrb[0].mxu0
        %1659 = vdwg.mxu0
        %v1660 = vld [vmem:[%s6] sm:$0xff]
        %v1661 = vld [vmem:[%s6 + $0x8] sm:$0xff]
        %v1662 = vld [vmem:[%s5] sm:$0xff]
        %v1663 = vld [vmem:[%s5 + $0x8] sm:$0xff]
        %1665 = vset.pattern.permute.xlu0 0
        %1666 = vperm.xlu0 %1665, %v1662
        %v1667 = vpop.permute.xlu0 %1666
        %1670 = vset.pattern.permute.xlu0 0
        %1671 = vperm.xlu0 %1670, %v1663
        %v1672 = vpop.permute.xlu0 %1671
        %v1674 = vmul.f32 %v1667, %v1652
        %v1675 = vmul.f32 %v1672, %v1657
        %v1676 = vand.u32 2147483647, %v1674
        %vm1677 = vcmp.le.f32.partialorder %v1676, 0.7853982
        %vm1678 = vcmp.lt.s32.totalorder %v1674, 0
        %v1679 = vand.u32 %v1674, 2139095040
        %v1680 = vshrl.u32 %v1679, 23
        %v1681 = vsub.s32 %v1680, 127
        %v1682 = vand.u32 2147483647, %v1674
        %v1683 = vand.u32 %v1682, 8388607
        %v1684 = vor.u32 %v1683, 8388608
        %v1685 = vsub.s32 0, %v1684
        %v1686 = vadd.s32 %v1681, 1
        %vm1687 = vcmp.gt.s32.totalorder %v1686, 0
        %v1688 = vsel %vm1687, %v1686, 0
        %v1689 = vshrl.u32 %v1688, 5
        %v1690 = vand.u32 %v1688, 31
        %v1691 = vsub.s32 32, %v1690
        %v1692 = vshrl.u32 683565275, %v1691
        %v1693 = vshll.u32 683565275, %v1690
        %v1694 = vshrl.u32 2475754826, %v1691
        %v1695 = vor.u32 %v1693, %v1694
        %v1696 = vshll.u32 2475754826, %v1690
        %v1697 = vshrl.u32 2131351028, %v1691
        %v1698 = vor.u32 %v1696, %v1697
        %v1699 = vshll.u32 2131351028, %v1690
        %v1700 = vshrl.u32 2102212464, %v1691
        %v1701 = vor.u32 %v1699, %v1700
        %v1702 = vshll.u32 2102212464, %v1690
        %v1703 = vshrl.u32 920167782, %v1691
        %v1704 = vor.u32 %v1702, %v1703
        %v1705 = vshll.u32 920167782, %v1690
        %v1706 = vshrl.u32 1326507024, %v1691
        %v1707 = vor.u32 %v1705, %v1706
        %vm1708 = vcmp.lt.s32.totalorder %v1689, 1
        %vm1709 = vcmp.lt.s32.totalorder %v1689, 2
        %vm1710 = vcmp.lt.s32.totalorder %v1689, 3
        %vm1711 = vcmp.lt.s32.totalorder %v1689, 4
        %v1712 = vsel %vm1708, %v1692, %v1695
        %v1713 = vsel %vm1711, %v1701, 2102212464
        %v1714 = vsel %vm1710, %v1698, %v1713
        %v1715 = vsel %vm1709, %v1712, %v1714
        %v1716 = vsel %vm1708, %v1695, %v1698
        %v1717 = vsel %vm1711, %v1704, 920167782
        %v1718 = vsel %vm1710, %v1701, %v1717
        %v1719 = vsel %vm1709, %v1716, %v1718
        %v1720 = vsel %vm1708, %v1698, %v1701
        %v1721 = vsel %vm1711, %v1707, 1326507024
        %v1722 = vsel %vm1710, %v1704, %v1721
        %v1723 = vsel %vm1709, %v1720, %v1722
        %v1724 = vshll.u32 %v1684, 8
        %v1725 = vmul.u32.u64.compose %v1724, %v1723
        %v1726 = vextract.low.u32 %v1725
        %v1727 = vextract.high.u32 %v1725
        %v1728 = vmul.u32.u64.compose %v1724, %v1719
        %v1729 = vextract.low.u32 %v1728
        %v1730 = vextract.high.u32 %v1728
        %v1731 = vmul.u32 %v1724, %v1715
        %v1732 = vadd.s32 %v1727, %v1729
        %vm1733 = vc.u32 %v1727, %v1729
        %v1734 = vadd.s32 %v1730, 1
        %v1735 = vsel %vm1733, %v1734, %v1730
        %v1736 = vadd.s32 %v1731, %v1735
        %v1737 = vadd.s32 %v1736, 536870912
        %v1738 = vshrl.u32 %v1737, 30
        %v1739 = vshll.u32 %v1738, 30
        %v1740 = vsub.s32 %v1736, %v1739
        %vm1741 = vcmp.lt.s32.totalorder %v1740, 0
        %v1742 = vsub.s32 0, %v1740
        %v1743 = vsel %vm1741, %v1742, %v1740
        %v1744 = vclz %v1743
        %v1745 = vsub.s32 %v1744, 2
        %vm1746 = vcmp.gt.s32.totalorder 0, %v1745
        %v1747 = vsel %vm1746, 0, %v1745
        %v1748 = vsub.s32 32, %v1747
        %v1749 = vshll.u32 %v1740, %v1747
        %v1750 = vshrl.u32 %v1732, %v1748
        %v1751 = vor.u32 %v1749, %v1750
        %v1752 = vsub.s32 4294967266, %v1747
        %v1753 = vadd.s32 %v1752, 127
        %v1754 = vshll.u32 %v1753, 23
        %v1755 = vor.u32 4788187, %v1754
        %v1756 = vand.u32 2147483647, %v1755
        %v1758 = vcvt.s32.f32 %v1751
        %v1759 = vmul.f32 %v1758, %v1756
        %v1760 = vxor.u32 %v1759, 2147483648
        %v1761 = vsel %vm1678, %v1760, %v1759
        %v1762 = vsub.s32 4, %v1738
        %v1763 = vsel %vm1678, %v1762, %v1738
        %v1764 = vsel %vm1677, %v1674, %v1761
        %v1765 = vsel %vm1677, 0, %v1763
        %v1766 = vcosq.f32.pop %v1764
        %v1767 = vsinq.f32.pop %v1764
        %vm1768 = vweird.f32 %v1674
        %v1769 = vand.u32 %v1765, 3
        %vm1770 = vcmp.lt.s32.totalorder %v1769, 2
        %vm1771 = vcmp.eq.s32.totalorder %v1769, 0
        %v1772 = vxor.u32 %v1767, 2147483648
        %v1773 = vsel %vm1771, %v1766, %v1772
        %vm1774 = vcmp.eq.s32.totalorder %v1769, 2
        %v1775 = vxor.u32 %v1766, 2147483648
        %v1776 = vsel %vm1774, %v1775, %v1767
        %v1777 = vsel %vm1770, %v1773, %v1776
        %v1778 = vsel %vm1768, nan, %v1777
        %v1779 = vand.u32 2147483647, %v1675
        %vm1780 = vcmp.le.f32.partialorder %v1779, 0.7853982
        %vm1781 = vcmp.lt.s32.totalorder %v1675, 0
        %v1782 = vand.u32 %v1675, 2139095040
        %v1783 = vshrl.u32 %v1782, 23
        %v1784 = vsub.s32 %v1783, 127
        %v1785 = vand.u32 2147483647, %v1675
        %v1786 = vand.u32 %v1785, 8388607
        %v1787 = vor.u32 %v1786, 8388608
        %v1788 = vsub.s32 0, %v1787
        %v1789 = vadd.s32 %v1784, 1
        %vm1790 = vcmp.gt.s32.totalorder %v1789, 0
        %v1791 = vsel %vm1790, %v1789, 0
        %v1792 = vshrl.u32 %v1791, 5
        %v1793 = vand.u32 %v1791, 31
        %v1794 = vsub.s32 32, %v1793
        %v1795 = vshrl.u32 683565275, %v1794
        %v1796 = vshll.u32 683565275, %v1793
        %v1797 = vshrl.u32 2475754826, %v1794
        %v1798 = vor.u32 %v1796, %v1797
        %v1799 = vshll.u32 2475754826, %v1793
        %v1800 = vshrl.u32 2131351028, %v1794
        %v1801 = vor.u32 %v1799, %v1800
        %v1802 = vshll.u32 2131351028, %v1793
        %v1803 = vshrl.u32 2102212464, %v1794
        %v1804 = vor.u32 %v1802, %v1803
        %v1805 = vshll.u32 2102212464, %v1793
        %v1806 = vshrl.u32 920167782, %v1794
        %v1807 = vor.u32 %v1805, %v1806
        %v1808 = vshll.u32 920167782, %v1793
        %v1809 = vshrl.u32 1326507024, %v1794
        %v1810 = vor.u32 %v1808, %v1809
        %vm1811 = vcmp.lt.s32.totalorder %v1792, 1
        %vm1812 = vcmp.lt.s32.totalorder %v1792, 2
        %vm1813 = vcmp.lt.s32.totalorder %v1792, 3
        %vm1814 = vcmp.lt.s32.totalorder %v1792, 4
        %v1815 = vsel %vm1811, %v1795, %v1798
        %v1816 = vsel %vm1814, %v1804, 2102212464
        %v1817 = vsel %vm1813, %v1801, %v1816
        %v1818 = vsel %vm1812, %v1815, %v1817
        %v1819 = vsel %vm1811, %v1798, %v1801
        %v1820 = vsel %vm1814, %v1807, 920167782
        %v1821 = vsel %vm1813, %v1804, %v1820
        %v1822 = vsel %vm1812, %v1819, %v1821
        %v1823 = vsel %vm1811, %v1801, %v1804
        %v1824 = vsel %vm1814, %v1810, 1326507024
        %v1825 = vsel %vm1813, %v1807, %v1824
        %v1826 = vsel %vm1812, %v1823, %v1825
        %v1827 = vshll.u32 %v1787, 8
        %v1828 = vmul.u32.u64.compose %v1827, %v1826
        %v1829 = vextract.low.u32 %v1828
        %v1830 = vextract.high.u32 %v1828
        %v1831 = vmul.u32.u64.compose %v1827, %v1822
        %v1832 = vextract.low.u32 %v1831
        %v1833 = vextract.high.u32 %v1831
        %v1834 = vmul.u32 %v1827, %v1818
        %v1835 = vadd.s32 %v1830, %v1832
        %vm1836 = vc.u32 %v1830, %v1832
        %v1837 = vadd.s32 %v1833, 1
        %v1838 = vsel %vm1836, %v1837, %v1833
        %v1839 = vadd.s32 %v1834, %v1838
        %v1840 = vadd.s32 %v1839, 536870912
        %v1841 = vshrl.u32 %v1840, 30
        %v1842 = vshll.u32 %v1841, 30
        %v1843 = vsub.s32 %v1839, %v1842
        %vm1844 = vcmp.lt.s32.totalorder %v1843, 0
        %v1845 = vsub.s32 0, %v1843
        %v1846 = vsel %vm1844, %v1845, %v1843
        %v1847 = vclz %v1846
        %v1848 = vsub.s32 %v1847, 2
        %vm1849 = vcmp.gt.s32.totalorder 0, %v1848
        %v1850 = vsel %vm1849, 0, %v1848
        %v1851 = vsub.s32 32, %v1850
        %v1852 = vshll.u32 %v1843, %v1850
        %v1853 = vshrl.u32 %v1835, %v1851
        %v1854 = vor.u32 %v1852, %v1853
        %v1855 = vsub.s32 4294967266, %v1850
        %v1856 = vadd.s32 %v1855, 127
        %v1857 = vshll.u32 %v1856, 23
        %v1858 = vor.u32 4788187, %v1857
        %v1859 = vand.u32 2147483647, %v1858
        %v1861 = vcvt.s32.f32 %v1854
        %v1862 = vmul.f32 %v1861, %v1859
        %v1863 = vxor.u32 %v1862, 2147483648
        %v1864 = vsel %vm1781, %v1863, %v1862
        %v1865 = vsub.s32 4, %v1841
        %v1866 = vsel %vm1781, %v1865, %v1841
        %v1867 = vsel %vm1780, %v1675, %v1864
        %v1868 = vsel %vm1780, 0, %v1866
        %v1869 = vcosq.f32.pop %v1867
        %v1870 = vsinq.f32.pop %v1867
        %vm1871 = vweird.f32 %v1675
        %v1872 = vand.u32 %v1868, 3
        %vm1873 = vcmp.lt.s32.totalorder %v1872, 2
        %vm1874 = vcmp.eq.s32.totalorder %v1872, 0
        %v1875 = vxor.u32 %v1870, 2147483648
        %v1876 = vsel %vm1874, %v1869, %v1875
        %vm1877 = vcmp.eq.s32.totalorder %v1872, 2
        %v1878 = vxor.u32 %v1869, 2147483648
        %v1879 = vsel %vm1877, %v1878, %v1870
        %v1880 = vsel %vm1873, %v1876, %v1879
        %v1881 = vsel %vm1871, nan, %v1880
        %v1882 = vsub.f32 1.0, %v1778
        %v1883 = vsub.f32 1.0, %v1881
        %1885 = vset.pattern.permute.xlu0 0
        %1886 = vperm.xlu0 %1885, %v1660
        %v1887 = vpop.permute.xlu0 %1886
        %1890 = vset.pattern.permute.xlu0 0
        %1891 = vperm.xlu0 %1890, %v1661
        %v1892 = vpop.permute.xlu0 %1891
        %v1894 = vmul.f32 %v1887, %v1882
        %v1895 = vmul.f32 %v1892, %v1883
        %v1896 = vadd.f32 %v1652, %v1894
        %v1897 = vadd.f32 %v1657, %v1895
        %v1898 = vld [vmem:[%s7] sm:$0xff]
        %v1899 = vld [vmem:[%s7 + $0x8] sm:$0xff]
        %v1900 = vld [vmem:[%s8] sm:$0xff]
        %v1901 = vld [vmem:[%s8 + $0x8] sm:$0xff]
        %1903 = vset.pattern.permute.xlu0 0
        %1904 = vperm.xlu0 %1903, %v1900
        %v1905 = vpop.permute.xlu0 %1904
        %1908 = vset.pattern.permute.xlu0 0
        %1909 = vperm.xlu0 %1908, %v1901
        %v1910 = vpop.permute.xlu0 %1909
        %vm1912 = vcmask 130048
        %v1914 = vsel %vm1912, %v1898, 0
        %v1917 = vsel %vm1912, %v1899, 0
        %1919 = vmatprep.subr.mxu0 0.0
        %1920 = vmatpush1.msra.mxu0 %v1896
        %1921 = vmatprep.subr.mxu0 0.0
        %1922 = vmatpush1.msra.mxu0 %v1897
        %1923 = vmatprep.subr.mxu0 0.0
        %1924 = vmatpush1.msra.mxu0 0.0
        %1925 = vmatprep.subr.mxu0 0.0
        %1926 = vmatpush1.msra.mxu0 0.0
        %1927 = vmatprep.subr.mxu0 0.0
        %1928 = vmatpush1.msra.mxu0 0.0
        %1929 = vmatprep.subr.mxu0 0.0
        %1930 = vmatpush1.msra.mxu0 0.0
        %1931 = vmatprep.subr.mxu0 0.0
        %1932 = vmatpush1.msra.mxu0 0.0
        %1933 = vmatprep.subr.mxu0 0.0
        %1934 = vmatpush1.msra.mxu0 0.0
        %1935 = vmatprep.subr.mxu0 0.0
        %1936 = vmatpush1.msra.mxu0 0.0
        %1937 = vmatprep.subr.mxu0 0.0
        %1938 = vmatpush1.msra.mxu0 0.0
        %1939 = vmatprep.subr.mxu0 0.0
        %1940 = vmatpush1.msra.mxu0 0.0
        %1941 = vmatprep.subr.mxu0 0.0
        %1942 = vmatpush1.msra.mxu0 0.0
        %1943 = vmatprep.subr.mxu0 0.0
        %1944 = vmatpush1.msra.mxu0 0.0
        %1945 = vmatprep.subr.mxu0 0.0
        %1946 = vmatpush1.msra.mxu0 0.0
        %1947 = vmatprep.subr.mxu0 0.0
        %1948 = vmatpush1.msra.mxu0 0.0
        %1949 = vmatprep.subr.mxu0 0.0
        %1950 = vmatpush1.msra.mxu0 0.0
        %1951 = vmatprep.subr.mxu0 0.0
        %1952 = vmatpush1.msra.mxu0 0.0
        %1953 = vmatprep.subr.mxu0 0.0
        %1954 = vmatpush1.msra.mxu0 0.0
        %1955 = vmatprep.subr.mxu0 0.0
        %1956 = vmatpush1.msra.mxu0 0.0
        %1957 = vmatprep.subr.mxu0 0.0
        %1958 = vmatpush1.msra.mxu0 0.0
        %1959 = vmatprep.subr.mxu0 0.0
        %1960 = vmatpush1.msra.mxu0 0.0
        %1961 = vmatprep.subr.mxu0 0.0
        %1962 = vmatpush1.msra.mxu0 0.0
        %1963 = vmatprep.subr.mxu0 0.0
        %1964 = vmatpush1.msra.mxu0 0.0
        %1965 = vmatprep.subr.mxu0 0.0
        %1966 = vmatpush1.msra.mxu0 0.0
        %1967 = vmatprep.subr.mxu0 0.0
        %1968 = vmatpush1.msra.mxu0 0.0
        %1969 = vmatprep.subr.mxu0 0.0
        %1970 = vmatpush1.msra.mxu0 0.0
        %1971 = vmatprep.subr.mxu0 0.0
        %1972 = vmatpush1.msra.mxu0 0.0
        %1973 = vmatprep.subr.mxu0 0.0
        %1974 = vmatpush1.msra.mxu0 0.0
        %1975 = vmatprep.subr.mxu0 0.0
        %1976 = vmatpush1.msra.mxu0 0.0
        %1977 = vmatprep.subr.mxu0 0.0
        %1978 = vmatpush1.msra.mxu0 0.0
        %1979 = vmatprep.subr.mxu0 0.0
        %1980 = vmatpush1.msra.mxu0 0.0
        %1981 = vmatprep.subr.mxu0 0.0
        %1982 = vmatpush1.msra.mxu0 0.0
        %1983 = vmatprep.mubr.f32.mxu0 0.0
        %1984 = vmatmul.mubr.f32.gmra.mrb[0].mxu0 %v1914
        %v1985 = vpop.f32.mrb[0].mxu0
        %v1986 = vadd.f32 %v1905, %v1985
        %v1987 = vpop.f32.mrb[0].mxu0
        %1988 = vmatprep.mubr.f32.mxu0 0.0
        %1989 = vmatmul.mubr.f32.gmra.mrb[0].mxu0 %v1917
        %v1990 = vpop.f32.mrb[0].mxu0
        %v1991 = vadd.f32 %v1910, %v1990
        %v1992 = vpop.f32.mrb[0].mxu0
        %1993 = vdwg.mxu0
        %v1994 = vadd.f32 %v749, %v1986
        %v1995 = vadd.f32 %v752, %v1991
        %1996 = vst [vmem:[%s298] sm:$0xff] %v1994
        %1997 = vst [vmem:[%s298 + $0x8] sm:$0xff] %v1995
        %s1998 = sand.u32 %s213, 1
        %s1999 = scalar_lea.sflag [#allocation5], %s1998
        %s2000 = sand.u32 %s213, 1
        %s2001 = smul.addr %s2000, 16
        %s2002 = scalar_lea.vmem [#allocation4], %s2001
        // Predicated region
        $region305: #{tpu_custom_call.1} parent=51 // pred_check
          %p2003 = pneg %p223
        $region306: #{tpu_custom_call.1} parent=51 // pred_check_branch
          %2005 = sbr.rel (%p2003) target = $region308
        $region307: #{tpu_custom_call.1} parent=51 // pred_region
          %s2007 = ssub.s32 256, 256
          %2008 = vsyncadd %s1999, %s2007
          %s2009 = smul.addr %s27, 6
          %s2010 = sadd.s32 %s28, %s2009
          %s2011 = smul.addr %s2010, 128
          %s2012 = scalar_lea.hbm %s9, %s2011
          %s2013 = sshll.u32 %s2002, 4
          %s2014 = int_to_ptr.vmem [resolvable:$true] %s2013
          %2019 = dma.vmem_to_hbm [thread:$0]  %s2014, 256, %s2012, %s1999, 128, 384, 8
        $region308: #{tpu_custom_call.1} parent=51 // pred_fallthru
          _
      $region52: #{tpu_custom_call.1} parent=5 // pred_fallthru
        _
      %p2020 = scmp.le.s32.totalorder 2, %s18
      // Predicated region
      $region309: #{tpu_custom_call.1} parent=5 // pred_check
        %p2021 = pneg %p2020
      $region310: #{tpu_custom_call.1} parent=5 // pred_check_branch
        %2023 = sbr.rel (%p2021) target = $region312
      $region311: #{tpu_custom_call.1} parent=5 // pred_region
        %s2024 = ssub.s32 %s18, 2
        // Predicated region
        $region313: #{tpu_custom_call.1} parent=311 // pred_check
          %p2025 = pneg %p229
        $region314: #{tpu_custom_call.1} parent=311 // pred_check_branch
          %2027 = sbr.rel (%p2025) target = $region316
        $region315: #{tpu_custom_call.1} parent=311 // pred_region
          %s2028 = sand.u32 %s214, 1
          %s2029 = scalar_lea.sflag [#allocation5], %s2028
          %s2030 = sand.u32 %s214, 1
          %s2031 = smul.addr %s2030, 16
          %s2032 = scalar_lea.vmem [#allocation4], %s2031
          %2033 = dma.done %s2029, 256
        $region316: #{tpu_custom_call.1} parent=311 // pred_fallthru
          _
      $region312: #{tpu_custom_call.1} parent=5 // pred_fallthru
        _
    $region6: #{tpu_custom_call.1} parent=1 // loop_footer
      %s22 = sadd.s32 1, %s18
    $region7: #{tpu_custom_call.1} parent=1 // loop_footer_branch
      %17 = sbr.rel target = $region3
    $region8: #{tpu_custom_call.1} parent=1 // loop_exit
      _
    %2034 = vsyncpa [#allocation5], 1
    %s2035 = scalar_lea.sflag [#allocation5], 1
    %2036 = vsyncpa %s2035, 1
  %2037 = vsyncmov [#allocation3]
  %s2038 = vpop.sfrf %2037
  %p2039 = scmp.eq.s32.totalorder %s2038, 0
  %p2040 = pneg %p2039
  %2042 = shalt.err (%p2040)
  %s2043 = scalar_lea.sflag [#allocation3], 1
  %2044 = vsyncmov %s2043
  %s2045 = vpop.sfrf %2044
  %p2046 = scmp.eq.s32.totalorder %s2045, 0
  %p2047 = pneg %p2046
  %2049 = shalt.err (%p2047)

</llo_original>
